<compile_context>
chip_gen: v6e
topology: v6e:2x2x1
jax: 0.10.0
libtpu: 0.0.40
codegen_flags: <defaults>
</compile_context>

<pallas_src>
import functools

import jax
import jax.numpy as jnp
from jax.experimental import pallas as pl
from jax.experimental.pallas import tpu as pltpu


# ----------------------------- helpers ------------------------------------- #
def _round_up(n, m):
    return ((n + m - 1) // m) * m


def _silu(x):
    return x * jax.nn.sigmoid(x)


# ----------------------------- kernels ------------------------------------- #
def _block_cond_kernel(x_ref, c_ref,
                       w1x_ref, w1c_ref, b1_ref,
                       w2x_ref, w2c_ref, b2_ref,
                       w3x_ref, w3c_ref, b3_ref,
                       o_ref, *, residual):
    """Conditional Block: fc_i([a, c]) = a @ Wx_i + c @ Wc_i + b_i, SiLU, residual.

    Each layer's conditioning matmul is computed right before its use so no
    long-lived fused block occupies vregs across the whole body."""
    x = x_ref[...]                      # bf16 (TILE_B, in_dim)
    c = c_ref[...]                      # bf16 (TILE_B, c_dim)

    def layer(a, wx_ref, wc_ref, b_ref):
        s = (jnp.dot(a, wx_ref[...], preferred_element_type=jnp.float32)
             + jnp.dot(c, wc_ref[...], preferred_element_type=jnp.float32)
             + b_ref[...])              # f32 accumulate + f32 bias
        return _silu(s)                 # f32 elementwise tail

    h = layer(x, w1x_ref, w1c_ref, b1_ref)
    h = layer(h.astype(jnp.bfloat16), w2x_ref, w2c_ref, b2_ref)
    h = layer(h.astype(jnp.bfloat16), w3x_ref, w3c_ref, b3_ref)
    if residual:
        h = h + x.astype(jnp.float32)
    o_ref[...] = h.astype(o_ref.dtype)


def _block_plain_kernel(x_ref,
                        w1_ref, b1_ref, w2_ref, b2_ref, w3_ref, b3_ref,
                        o_ref, *, residual):
    """Unconditional Block (c is None)."""
    x = x_ref[...]                      # bf16 (TILE_B, in_dim)

    def layer(a, w_ref, b_ref):
        return _silu(jnp.dot(a, w_ref[...], preferred_element_type=jnp.float32)
                     + b_ref[...])

    h = layer(x, w1_ref, b1_ref)
    h = layer(h.astype(jnp.bfloat16), w2_ref, b2_ref)
    h = layer(h.astype(jnp.bfloat16), w3_ref, b3_ref)
    if residual:
        h = h + x.astype(jnp.float32)
    o_ref[...] = h.astype(o_ref.dtype)


# ----------------------------- wrapper ------------------------------------- #
def block_forward(x, packed, c=None, residual=True, tile_b=512,
                  out_dtype=jnp.float32, core_parallel=False):
    """Pallas wrapper for Block.forward on packed (bf16-weight) parameters.

    core_parallel=True uses pltpu.CORE_PARALLEL on the batch grid axis (v7x);
    leave False on single-TensorCore chips.
    """
    d = packed["dims"]
    in_dim, out_dim = d["in"], d["out"]
    B = x.shape[0]
    assert x.shape == (B, in_dim)
    if residual:
        assert in_dim == out_dim

    # Large, sublane-aligned batch tile; single tile when B is small.
    tile_b = min(tile_b, _round_up(B, 8))
    b_pad = _round_up(B, tile_b)
    grid = (b_pad // tile_b,)

    def to_rows(a):
        a = a.astype(jnp.bfloat16)              # bf16 activations into the kernel
        if b_pad != B:
            a = jnp.pad(a, ((0, b_pad - B), (0, 0)))
        return a

    xp = to_rows(x)

    def row_spec(width):                        # per-grid-step activation tile
        return pl.BlockSpec((tile_b, width), lambda i: (i, 0))

    def res_spec(a):                            # weights/biases: resident across grid
        # NOTE: pipeline_mode=pl.Buffered(1) would halve their VMEM footprint; not
        # needed at these sizes, and left off to keep lowering maximally portable.
        return pl.BlockSpec(a.shape, lambda i: (0, 0))

    if c is None:
        kernel = functools.partial(_block_plain_kernel, residual=residual)
        args = (xp, packed["w1"], packed["b1"], packed["w2"], packed["b2"],
                packed["w3"], packed["b3"])
        in_specs = [row_spec(in_dim)] + [res_spec(a) for a in args[1:]]
    else:
        c_dim = d["c"]
        assert c.shape == (B, c_dim)
        cp = to_rows(c)
        kernel = functools.partial(_block_cond_kernel, residual=residual)
        args = (xp, cp,
                packed["w1x"], packed["w1c"], packed["b1"],
                packed["w2x"], packed["w2c"], packed["b2"],
                packed["w3x"], packed["w3c"], packed["b3"])
        in_specs = ([row_spec(in_dim), row_spec(c_dim)]
                    + [res_spec(a) for a in args[2:]])

    semantics = (pltpu.CORE_PARALLEL,) if core_parallel else ("parallel",)

    out = pl.pallas_call(
        kernel,
        grid=grid,
        in_specs=in_specs,
        out_specs=pl.BlockSpec((tile_b, out_dim), lambda i: (i, 0)),
        out_shape=jax.ShapeDtypeStruct((b_pad, out_dim), out_dtype),
        compiler_params=pltpu.CompilerParams(dimension_semantics=semantics),
    )(*args)
    return out[:B] if b_pad != B else out


# ----------------------------- params -------------------------------------- #
def _uniform(key, shape, bound):
    return jax.random.uniform(key, shape, jnp.float32, -bound, bound)


def init_cond_params(key, in_dim, c_dim, hid_dim, out_dim):
    """nn.Linear default init U(+-1/sqrt(fan_in)); weights stored (K, N) so no
    transpose is needed in the kernel; the concat weight is split into its
    x-column and c-column blocks."""
    ks = jax.random.split(key, 9)
    b1 = 1.0 / (in_dim + c_dim) ** 0.5
    b2 = 1.0 / (hid_dim + c_dim) ** 0.5
    return {
        "w1x": _uniform(ks[0], (in_dim, hid_dim), b1),
        "w1c": _uniform(ks[1], (c_dim, hid_dim), b1),
        "b1": _uniform(ks[2], (1, hid_dim), b1),
        "w2x": _uniform(ks[3], (hid_dim, hid_dim), b2),
        "w2c": _uniform(ks[4], (c_dim, hid_dim), b2),
        "b2": _uniform(ks[5], (1, hid_dim), b2),
        "w3x": _uniform(ks[6], (hid_dim, out_dim), b2),
        "w3c": _uniform(ks[7], (c_dim, out_dim), b2),
        "b3": _uniform(ks[8], (1, out_dim), b2),
    }


def init_plain_params(key, in_dim, hid_dim, out_dim):
    ks = jax.random.split(key, 6)
    b1 = 1.0 / in_dim ** 0.5
    b2 = 1.0 / hid_dim ** 0.5
    return {
        "w1": _uniform(ks[0], (in_dim, hid_dim), b1),
        "b1": _uniform(ks[1], (1, hid_dim), b1),
        "w2": _uniform(ks[2], (hid_dim, hid_dim), b2),
        "b2": _uniform(ks[3], (1, hid_dim), b2),
        "w3": _uniform(ks[4], (hid_dim, out_dim), b2),
        "b3": _uniform(ks[5], (1, out_dim), b2),
    }


def pack_cond_params(p, in_dim, c_dim, hid_dim, out_dim):
    """Cast weights to bf16 (biases stay f32); no HBM-side feature padding."""
    packed = {k: (v.astype(jnp.bfloat16) if k.startswith("w")
                  else v.astype(jnp.float32)) for k, v in p.items()}
    packed["dims"] = {"in": in_dim, "c": c_dim, "hid": hid_dim, "out": out_dim}
    return packed


def pack_plain_params(p, in_dim, hid_dim, out_dim):
    packed = {k: (v.astype(jnp.bfloat16) if k.startswith("w")
                  else v.astype(jnp.float32)) for k, v in p.items()}
    packed["dims"] = {"in": in_dim, "c": None, "hid": hid_dim, "out": out_dim}
    return packed


# ----------------------------- references ---------------------------------- #
def _ref_cond(x, c, p, compute_dtype=jnp.float32):
    xr = x.astype(compute_dtype)
    cr = c.astype(compute_dtype)

    def mm(a, w):
        return jnp.dot(a.astype(compute_dtype), w.astype(compute_dtype),
                       preferred_element_type=jnp.float32)

    h = jax.nn.silu(mm(xr, p["w1x"]) + mm(cr, p["w1c"]) + p["b1"])
    h = jax.nn.silu(mm(h, p["w2x"]) + mm(cr, p["w2c"]) + p["b2"])
    h = jax.nn.silu(mm(h, p["w3x"]) + mm(cr, p["w3c"]) + p["b3"])
    return h + xr.astype(jnp.float32)


def _ref_plain(x, p, compute_dtype=jnp.float32):
    xr = x.astype(compute_dtype)

    def mm(a, w):
        return jnp.dot(a.astype(compute_dtype), w.astype(compute_dtype),
                       preferred_element_type=jnp.float32)

    h = jax.nn.silu(mm(xr, p["w1"]) + p["b1"])
    h = jax.nn.silu(mm(h, p["w2"]) + p["b2"])
    h = jax.nn.silu(mm(h, p["w3"]) + p["b3"])
    return h + xr.astype(jnp.float32)


# ----------------------------- test ----------------------------------------- #
if __name__ == "__main__":
    # residual => in_dim == out_dim; B=200 exercises batch padding/masked last dims.
    B, in_dim, c_dim, hid_dim, out_dim = 200, 32, 16, 64, 32

    key = jax.random.PRNGKey(0)
    kx, kc, kp1, kp2 = jax.random.split(key, 4)
    x = jax.random.normal(kx, (B, in_dim), jnp.float32)
    c = jax.random.normal(kc, (B, c_dim), jnp.float32)

    # conditional path (CLinear), default (single, large) batch tile
    p_cond = init_cond_params(kp1, in_dim, c_dim, hid_dim, out_dim)
    packed_cond = pack_cond_params(p_cond, in_dim, c_dim, hid_dim, out_dim)
    y_cond = jax.block_until_ready(
        block_forward(x, packed_cond, c=c, residual=True))
    assert y_cond.shape == (B, out_dim)
    # tight check vs a reference using the same bf16-matmul / f32-accumulate math
    ref_bf16 = _ref_cond(x, c, p_cond, compute_dtype=jnp.bfloat16)
    assert jnp.allclose(y_cond, ref_bf16, atol=2e-3, rtol=2e-3)
    # loose check vs the full-f32 PyTorch-equivalent math (bf16 weight cast tradeoff)
    ref_f32 = _ref_cond(x, c, p_cond)
    assert jnp.allclose(y_cond, ref_f32, atol=1e-1, rtol=1e-1)

    # conditional path with a small tile to exercise a multi-step grid
    y_cond_multi = jax.block_until_ready(
        block_forward(x, packed_cond, c=c, residual=True, tile_b=64))
    assert y_cond_multi.shape == (B, out_dim)
    assert jnp.allclose(y_cond_multi, ref_bf16, atol=2e-3, rtol=2e-3)

    # unconditional path (c is None)
    p_plain = init_plain_params(kp2, in_dim, hid_dim, out_dim)
    packed_plain = pack_plain_params(p_plain, in_dim, hid_dim, out_dim)
    y_plain = jax.block_until_ready(
        block_forward(x, packed_plain, c=None, residual=True))
    assert y_plain.shape == (B, out_dim)
    assert jnp.allclose(y_plain, _ref_plain(x, p_plain, jnp.bfloat16),
                        atol=2e-3, rtol=2e-3)
    assert jnp.allclose(y_plain, _ref_plain(x, p_plain), atol=1e-1, rtol=1e-1)

    print("KERNEL_OK")
</pallas_src>

<mosaic_0001>
module attributes {stable_mosaic.version = 11 : i64} {
  func.func @_block_cond_kernel(%arg0: i32, %arg1: memref<200x32xbf16, #tpu.memory_space<vmem>>, %arg2: memref<200x16xbf16, #tpu.memory_space<vmem>>, %arg3: memref<32x64xbf16, #tpu.memory_space<vmem>>, %arg4: memref<16x64xbf16, #tpu.memory_space<vmem>>, %arg5: memref<1x64xf32, #tpu.memory_space<vmem>>, %arg6: memref<64x64xbf16, #tpu.memory_space<vmem>>, %arg7: memref<16x64xbf16, #tpu.memory_space<vmem>>, %arg8: memref<1x64xf32, #tpu.memory_space<vmem>>, %arg9: memref<64x32xbf16, #tpu.memory_space<vmem>>, %arg10: memref<16x32xbf16, #tpu.memory_space<vmem>>, %arg11: memref<1x32xf32, #tpu.memory_space<vmem>>, %arg12: memref<200x32xf32, #tpu.memory_space<vmem>>) attributes {dimension_semantics = [#tpu.dimension_semantics<parallel>], iteration_bounds = array<i64: 1>, scalar_prefetch = 0 : i64, scratch_operands = 0 : i64, tpu.core_type = #tpu.core_type<tc>, window_params = [{transform_indices = @transform_0, window_bounds = array<i64: 200, 32>}, {transform_indices = @transform_1, window_bounds = array<i64: 200, 16>}, {pipeline_mode = #tpu.pipeline_mode<synchronous>, transform_indices = @transform_2, window_bounds = array<i64: 32, 64>}, {pipeline_mode = #tpu.pipeline_mode<synchronous>, transform_indices = @transform_3, window_bounds = array<i64: 16, 64>}, {pipeline_mode = #tpu.pipeline_mode<synchronous>, transform_indices = @transform_4, window_bounds = array<i64: 1, 64>}, {pipeline_mode = #tpu.pipeline_mode<synchronous>, transform_indices = @transform_5, window_bounds = array<i64: 64, 64>}, {pipeline_mode = #tpu.pipeline_mode<synchronous>, transform_indices = @transform_6, window_bounds = array<i64: 16, 64>}, {pipeline_mode = #tpu.pipeline_mode<synchronous>, transform_indices = @transform_7, window_bounds = array<i64: 1, 64>}, {pipeline_mode = #tpu.pipeline_mode<synchronous>, transform_indices = @transform_8, window_bounds = array<i64: 64, 32>}, {pipeline_mode = #tpu.pipeline_mode<synchronous>, transform_indices = @transform_9, window_bounds = array<i64: 16, 32>}, {pipeline_mode = #tpu.pipeline_mode<synchronous>, transform_indices = @transform_10, window_bounds = array<i64: 1, 32>}, {transform_indices = @transform_11, window_bounds = array<i64: 200, 32>}]} {
    %c0 = arith.constant 0 : index
    %c0_0 = arith.constant 0 : index
    %0 = vector.load %arg1[%c0, %c0_0] : memref<200x32xbf16, #tpu.memory_space<vmem>>, vector<200x32xbf16>
    %c0_1 = arith.constant 0 : index
    %c0_2 = arith.constant 0 : index
    %1 = vector.load %arg2[%c0_1, %c0_2] : memref<200x16xbf16, #tpu.memory_space<vmem>>, vector<200x16xbf16>
    %c0_3 = arith.constant 0 : index
    %c0_4 = arith.constant 0 : index
    %2 = vector.load %arg3[%c0_3, %c0_4] : memref<32x64xbf16, #tpu.memory_space<vmem>>, vector<32x64xbf16>
    %cst = arith.constant dense<0.000000e+00> : vector<200x64xf32>
    %3 = tpu.matmul %0, %2, %cst {dimension_numbers = #tpu.dot_dimension_numbers<[1], [0], [0], [1], [0, 0, 1, 1], [], []>} : vector<200x32xbf16>, vector<32x64xbf16>, vector<200x64xf32> -> vector<200x64xf32>
    %c0_5 = arith.constant 0 : index
    %c0_6 = arith.constant 0 : index
    %4 = vector.load %arg4[%c0_5, %c0_6] : memref<16x64xbf16, #tpu.memory_space<vmem>>, vector<16x64xbf16>
    %cst_7 = arith.constant dense<0.000000e+00> : vector<200x64xf32>
    %5 = tpu.matmul %1, %4, %cst_7 {dimension_numbers = #tpu.dot_dimension_numbers<[1], [0], [0], [1], [0, 0, 1, 1], [], []>} : vector<200x16xbf16>, vector<16x64xbf16>, vector<200x64xf32> -> vector<200x64xf32>
    %6 = arith.addf %3, %5 : vector<200x64xf32>
    %c0_8 = arith.constant 0 : index
    %c0_9 = arith.constant 0 : index
    %7 = vector.load %arg5[%c0_8, %c0_9] : memref<1x64xf32, #tpu.memory_space<vmem>>, vector<1x64xf32>
    %8 = vector.broadcast %7 : vector<1x64xf32> to vector<200x64xf32>
    %9 = arith.addf %6, %8 : vector<200x64xf32>
    %10 = arith.negf %9 : vector<200x64xf32>
    %11 = math.exp %10 : vector<200x64xf32>
    %cst_10 = arith.constant 1.000000e+00 : f32
    %12 = vector.broadcast %cst_10 : f32 to vector<200x64xf32>
    %13 = arith.addf %12, %11 : vector<200x64xf32>
    %14 = arith.divf %12, %13 : vector<200x64xf32>
    %15 = arith.mulf %9, %14 : vector<200x64xf32>
    %16 = arith.truncf %15 : vector<200x64xf32> to vector<200x64xbf16>
    %c0_11 = arith.constant 0 : index
    %c0_12 = arith.constant 0 : index
    %17 = vector.load %arg6[%c0_11, %c0_12] : memref<64x64xbf16, #tpu.memory_space<vmem>>, vector<64x64xbf16>
    %cst_13 = arith.constant dense<0.000000e+00> : vector<200x64xf32>
    %18 = tpu.matmul %16, %17, %cst_13 {dimension_numbers = #tpu.dot_dimension_numbers<[1], [0], [0], [1], [0, 0, 1, 1], [], []>} : vector<200x64xbf16>, vector<64x64xbf16>, vector<200x64xf32> -> vector<200x64xf32>
    %c0_14 = arith.constant 0 : index
    %c0_15 = arith.constant 0 : index
    %19 = vector.load %arg7[%c0_14, %c0_15] : memref<16x64xbf16, #tpu.memory_space<vmem>>, vector<16x64xbf16>
    %cst_16 = arith.constant dense<0.000000e+00> : vector<200x64xf32>
    %20 = tpu.matmul %1, %19, %cst_16 {dimension_numbers = #tpu.dot_dimension_numbers<[1], [0], [0], [1], [0, 0, 1, 1], [], []>} : vector<200x16xbf16>, vector<16x64xbf16>, vector<200x64xf32> -> vector<200x64xf32>
    %21 = arith.addf %18, %20 : vector<200x64xf32>
    %c0_17 = arith.constant 0 : index
    %c0_18 = arith.constant 0 : index
    %22 = vector.load %arg8[%c0_17, %c0_18] : memref<1x64xf32, #tpu.memory_space<vmem>>, vector<1x64xf32>
    %23 = vector.broadcast %22 : vector<1x64xf32> to vector<200x64xf32>
    %24 = arith.addf %21, %23 : vector<200x64xf32>
    %25 = arith.negf %24 : vector<200x64xf32>
    %26 = math.exp %25 : vector<200x64xf32>
    %cst_19 = arith.constant 1.000000e+00 : f32
    %27 = vector.broadcast %cst_19 : f32 to vector<200x64xf32>
    %28 = arith.addf %27, %26 : vector<200x64xf32>
    %29 = arith.divf %27, %28 : vector<200x64xf32>
    %30 = arith.mulf %24, %29 : vector<200x64xf32>
    %31 = arith.truncf %30 : vector<200x64xf32> to vector<200x64xbf16>
    %c0_20 = arith.constant 0 : index
    %c0_21 = arith.constant 0 : index
    %32 = vector.load %arg9[%c0_20, %c0_21] : memref<64x32xbf16, #tpu.memory_space<vmem>>, vector<64x32xbf16>
    %cst_22 = arith.constant dense<0.000000e+00> : vector<200x32xf32>
    %33 = tpu.matmul %31, %32, %cst_22 {dimension_numbers = #tpu.dot_dimension_numbers<[1], [0], [0], [1], [0, 0, 1, 1], [], []>} : vector<200x64xbf16>, vector<64x32xbf16>, vector<200x32xf32> -> vector<200x32xf32>
    %c0_23 = arith.constant 0 : index
    %c0_24 = arith.constant 0 : index
    %34 = vector.load %arg10[%c0_23, %c0_24] : memref<16x32xbf16, #tpu.memory_space<vmem>>, vector<16x32xbf16>
    %cst_25 = arith.constant dense<0.000000e+00> : vector<200x32xf32>
    %35 = tpu.matmul %1, %34, %cst_25 {dimension_numbers = #tpu.dot_dimension_numbers<[1], [0], [0], [1], [0, 0, 1, 1], [], []>} : vector<200x16xbf16>, vector<16x32xbf16>, vector<200x32xf32> -> vector<200x32xf32>
    %36 = arith.addf %33, %35 : vector<200x32xf32>
    %c0_26 = arith.constant 0 : index
    %c0_27 = arith.constant 0 : index
    %37 = vector.load %arg11[%c0_26, %c0_27] : memref<1x32xf32, #tpu.memory_space<vmem>>, vector<1x32xf32>
    %38 = vector.broadcast %37 : vector<1x32xf32> to vector<200x32xf32>
    %39 = arith.addf %36, %38 : vector<200x32xf32>
    %40 = arith.negf %39 : vector<200x32xf32>
    %41 = math.exp %40 : vector<200x32xf32>
    %cst_28 = arith.constant 1.000000e+00 : f32
    %42 = vector.broadcast %cst_28 : f32 to vector<200x32xf32>
    %43 = arith.addf %42, %41 : vector<200x32xf32>
    %44 = arith.divf %42, %43 : vector<200x32xf32>
    %45 = arith.mulf %39, %44 : vector<200x32xf32>
    %46 = arith.extf %0 : vector<200x32xbf16> to vector<200x32xf32>
    %47 = arith.addf %45, %46 : vector<200x32xf32>
    %c0_29 = arith.constant 0 : index
    %c0_30 = arith.constant 0 : index
    %48 = vector.load %arg12[%c0_29, %c0_30] : memref<200x32xf32, #tpu.memory_space<vmem>>, vector<200x32xf32>
    tpu.vector_store %arg12[%c0_29, %c0_30], %47 {strides = array<i32>} : memref<200x32xf32, #tpu.memory_space<vmem>>, vector<200x32xf32>,
    return
  }
  func.func @transform_0(%arg0: i32) -> (i32, i32) {
    %c0_i32 = arith.constant 0 : i32
    %c0_i32_0 = arith.constant 0 : i32
    return %arg0, %c0_i32 : i32, i32
  }
  func.func @transform_1(%arg0: i32) -> (i32, i32) {
    %c0_i32 = arith.constant 0 : i32
    %c0_i32_0 = arith.constant 0 : i32
    return %arg0, %c0_i32 : i32, i32
  }
  func.func @transform_2(%arg0: i32) -> (i32, i32) {
    %c0_i32 = arith.constant 0 : i32
    %c0_i32_0 = arith.constant 0 : i32
    %c0_i32_1 = arith.constant 0 : i32
    return %c0_i32, %c0_i32_0 : i32, i32
  }
  func.func @transform_3(%arg0: i32) -> (i32, i32) {
    %c0_i32 = arith.constant 0 : i32
    %c0_i32_0 = arith.constant 0 : i32
    %c0_i32_1 = arith.constant 0 : i32
    return %c0_i32, %c0_i32_0 : i32, i32
  }
  func.func @transform_4(%arg0: i32) -> (i32, i32) {
    %c0_i32 = arith.constant 0 : i32
    %c0_i32_0 = arith.constant 0 : i32
    %c0_i32_1 = arith.constant 0 : i32
    return %c0_i32, %c0_i32_0 : i32, i32
  }
  func.func @transform_5(%arg0: i32) -> (i32, i32) {
    %c0_i32 = arith.constant 0 : i32
    %c0_i32_0 = arith.constant 0 : i32
    %c0_i32_1 = arith.constant 0 : i32
    return %c0_i32, %c0_i32_0 : i32, i32
  }
  func.func @transform_6(%arg0: i32) -> (i32, i32) {
    %c0_i32 = arith.constant 0 : i32
    %c0_i32_0 = arith.constant 0 : i32
    %c0_i32_1 = arith.constant 0 : i32
    return %c0_i32, %c0_i32_0 : i32, i32
  }
  func.func @transform_7(%arg0: i32) -> (i32, i32) {
    %c0_i32 = arith.constant 0 : i32
    %c0_i32_0 = arith.constant 0 : i32
    %c0_i32_1 = arith.constant 0 : i32
    return %c0_i32, %c0_i32_0 : i32, i32
  }
  func.func @transform_8(%arg0: i32) -> (i32, i32) {
    %c0_i32 = arith.constant 0 : i32
    %c0_i32_0 = arith.constant 0 : i32
    %c0_i32_1 = arith.constant 0 : i32
    return %c0_i32, %c0_i32_0 : i32, i32
  }
  func.func @transform_9(%arg0: i32) -> (i32, i32) {
    %c0_i32 = arith.constant 0 : i32
    %c0_i32_0 = arith.constant 0 : i32
    %c0_i32_1 = arith.constant 0 : i32
    return %c0_i32, %c0_i32_0 : i32, i32
  }
  func.func @transform_10(%arg0: i32) -> (i32, i32) {
    %c0_i32 = arith.constant 0 : i32
    %c0_i32_0 = arith.constant 0 : i32
    %c0_i32_1 = arith.constant 0 : i32
    return %c0_i32, %c0_i32_0 : i32, i32
  }
  func.func @transform_11(%arg0: i32) -> (i32, i32) {
    %c0_i32 = arith.constant 0 : i32
    %c0_i32_0 = arith.constant 0 : i32
    return %arg0, %c0_i32 : i32, i32
  }
}

</mosaic_0001>

<llo_original>
// kernel: tpu_custom_call.1
$region0: #{tpu_custom_call.1}
  #allocation0 [shape = 'u32[]', space=smem, size = 0x4, offset = 0x4, fixed_abs, tag = 'smem constant byte address 0x4 - core index']
  #allocation1 [shape = 'u32[144,128]{1,0:T(1,128)}', space=vmem, size = 0x12000, scoped, tag = 'internal scratch']
  %s0 = inlined_call_operand.vmem [shape: bf16[200,32], index: 0, kind: input, shape index: {}]
  %s1 = inlined_call_operand.vmem [shape: bf16[200,16], index: 1, kind: input, shape index: {}]
  %s2 = inlined_call_operand.vmem [shape: bf16[32,64], index: 2, kind: input, shape index: {}]
  %s3 = inlined_call_operand.vmem [shape: bf16[16,64], index: 3, kind: input, shape index: {}]
  %s4 = inlined_call_operand.vmem [shape: f32[1,64], index: 4, kind: input, shape index: {}]
  %s5 = inlined_call_operand.vmem [shape: bf16[64,64], index: 5, kind: input, shape index: {}]
  %s6 = inlined_call_operand.vmem [shape: bf16[16,64], index: 6, kind: input, shape index: {}]
  %s7 = inlined_call_operand.vmem [shape: f32[1,64], index: 7, kind: input, shape index: {}]
  %s8 = inlined_call_operand.vmem [shape: bf16[64,32], index: 8, kind: input, shape index: {}]
  %s9 = inlined_call_operand.vmem [shape: bf16[16,32], index: 9, kind: input, shape index: {}]
  %s10 = inlined_call_operand.vmem [shape: f32[1,32], index: 10, kind: input, shape index: {}]
  %s11 = inlined_call_operand.vmem [shape: f32[200,32], index: 11, kind: output, shape index: {}]
  %s12 = sld [smem:[#allocation0]]
  $region54: #{tpu_custom_call.1} parent=0
    _
  %s14 = ssub.s32 1, %s12
  %s15 = scalar_select 0, %s14, %s12
  // Predicated region
  $region2: #{tpu_custom_call.1} parent=0 // pred_check
    _
  $region3: #{tpu_custom_call.1} parent=0 // pred_check_branch
    %17 = sbr.rel (0) target = $region5
  $region4: #{tpu_custom_call.1} parent=0 // pred_region
    _
  $region5: #{tpu_custom_call.1} parent=0 // pred_fallthru
    _
  // Predicated region
  $region6: #{tpu_custom_call.1} parent=0 // pred_check
    _
  $region7: #{tpu_custom_call.1} parent=0 // pred_check_branch
    %19 = sbr.rel (0) target = $region9
  $region8: #{tpu_custom_call.1} parent=0 // pred_region
    _
  $region9: #{tpu_custom_call.1} parent=0 // pred_fallthru
    _
  // Predicated region
  $region10: #{tpu_custom_call.1} parent=0 // pred_check
    _
  $region11: #{tpu_custom_call.1} parent=0 // pred_check_branch
    %21 = sbr.rel (0) target = $region13
  $region12: #{tpu_custom_call.1} parent=0 // pred_region
    _
  $region13: #{tpu_custom_call.1} parent=0 // pred_fallthru
    _
  // Predicated region
  $region14: #{tpu_custom_call.1} parent=0 // pred_check
    _
  $region15: #{tpu_custom_call.1} parent=0 // pred_check_branch
    %23 = sbr.rel (0) target = $region17
  $region16: #{tpu_custom_call.1} parent=0 // pred_region
    _
  $region17: #{tpu_custom_call.1} parent=0 // pred_fallthru
    _
  // Predicated region
  $region18: #{tpu_custom_call.1} parent=0 // pred_check
    _
  $region19: #{tpu_custom_call.1} parent=0 // pred_check_branch
    %25 = sbr.rel (0) target = $region21
  $region20: #{tpu_custom_call.1} parent=0 // pred_region
    _
  $region21: #{tpu_custom_call.1} parent=0 // pred_fallthru
    _
  // Predicated region
  $region22: #{tpu_custom_call.1} parent=0 // pred_check
    _
  $region23: #{tpu_custom_call.1} parent=0 // pred_check_branch
    %27 = sbr.rel (0) target = $region25
  $region24: #{tpu_custom_call.1} parent=0 // pred_region
    _
  $region25: #{tpu_custom_call.1} parent=0 // pred_fallthru
    _
  // Predicated region
  $region26: #{tpu_custom_call.1} parent=0 // pred_check
    _
  $region27: #{tpu_custom_call.1} parent=0 // pred_check_branch
    %29 = sbr.rel (0) target = $region29
  $region28: #{tpu_custom_call.1} parent=0 // pred_region
    _
  $region29: #{tpu_custom_call.1} parent=0 // pred_fallthru
    _
  // Predicated region
  $region30: #{tpu_custom_call.1} parent=0 // pred_check
    _
  $region31: #{tpu_custom_call.1} parent=0 // pred_check_branch
    %31 = sbr.rel (0) target = $region33
  $region32: #{tpu_custom_call.1} parent=0 // pred_region
    _
  $region33: #{tpu_custom_call.1} parent=0 // pred_fallthru
    _
  // Predicated region
  $region34: #{tpu_custom_call.1} parent=0 // pred_check
    _
  $region35: #{tpu_custom_call.1} parent=0 // pred_check_branch
    %33 = sbr.rel (0) target = $region37
  $region36: #{tpu_custom_call.1} parent=0 // pred_region
    _
  $region37: #{tpu_custom_call.1} parent=0 // pred_fallthru
    _
  // Predicated region
  $region38: #{tpu_custom_call.1} parent=0 // pred_check
    _
  $region39: #{tpu_custom_call.1} parent=0 // pred_check_branch
    %35 = sbr.rel (0) target = $region41
  $region40: #{tpu_custom_call.1} parent=0 // pred_region
    _
  $region41: #{tpu_custom_call.1} parent=0 // pred_fallthru
    _
  // Predicated region
  $region42: #{tpu_custom_call.1} parent=0 // pred_check
    _
  $region43: #{tpu_custom_call.1} parent=0 // pred_check_branch
    %37 = sbr.rel (0) target = $region45
  $region44: #{tpu_custom_call.1} parent=0 // pred_region
    _
  $region45: #{tpu_custom_call.1} parent=0 // pred_fallthru
    _
  %v39 = vld [vmem:[%s0] sm:$0xf]
  %v40 = vld [vmem:[%s0 + $0x4] sm:$0xf]
  %v41 = vld [vmem:[%s0 + $0x8] sm:$0xf]
  %v42 = vld [vmem:[%s0 + $0xc] sm:$0xf]
  %v43 = vld [vmem:[%s0 + $0x10] sm:$0xf]
  %v44 = vld [vmem:[%s0 + $0x14] sm:$0xf]
  %v45 = vld [vmem:[%s0 + $0x18] sm:$0xf]
  %v46 = vld [vmem:[%s0 + $0x1c] sm:$0xf]
  %v47 = vld [vmem:[%s0 + $0x20] sm:$0xf]
  %v48 = vld [vmem:[%s0 + $0x24] sm:$0xf]
  %v49 = vld [vmem:[%s0 + $0x28] sm:$0xf]
  %v50 = vld [vmem:[%s0 + $0x2c] sm:$0xf]
  %v51 = vld [vmem:[%s0 + $0x30] sm:$0xf]
  %v52 = vld [vmem:[%s0 + $0x34] sm:$0xf]
  %v53 = vld [vmem:[%s0 + $0x38] sm:$0xf]
  %v54 = vld [vmem:[%s0 + $0x3c] sm:$0xf]
  %v55 = vld [vmem:[%s0 + $0x40] sm:$0xf]
  %v56 = vld [vmem:[%s0 + $0x44] sm:$0xf]
  %v57 = vld [vmem:[%s0 + $0x48] sm:$0xf]
  %v58 = vld [vmem:[%s0 + $0x4c] sm:$0xf]
  %v59 = vld [vmem:[%s0 + $0x50] sm:$0xf]
  %v60 = vld [vmem:[%s0 + $0x54] sm:$0xf]
  %v61 = vld [vmem:[%s0 + $0x58] sm:$0xf]
  %v62 = vld [vmem:[%s0 + $0x5c] sm:$0xf]
  %v63 = vld [vmem:[%s0 + $0x60] sm:$0xf]
  %v64 = vld [vmem:[%s1] sm:$0xf]
  %v65 = vld [vmem:[%s1 + $0x4] sm:$0xf]
  %v66 = vld [vmem:[%s1 + $0x8] sm:$0xf]
  %v67 = vld [vmem:[%s1 + $0xc] sm:$0xf]
  %v68 = vld [vmem:[%s1 + $0x10] sm:$0xf]
  %v69 = vld [vmem:[%s1 + $0x14] sm:$0xf]
  %v70 = vld [vmem:[%s1 + $0x18] sm:$0xf]
  %v71 = vld [vmem:[%s1 + $0x1c] sm:$0xf]
  %v72 = vld [vmem:[%s1 + $0x20] sm:$0xf]
  %v73 = vld [vmem:[%s1 + $0x24] sm:$0xf]
  %v74 = vld [vmem:[%s1 + $0x28] sm:$0xf]
  %v75 = vld [vmem:[%s1 + $0x2c] sm:$0xf]
  %v76 = vld [vmem:[%s1 + $0x30] sm:$0xf]
  %v77 = vld [vmem:[%s1 + $0x34] sm:$0xf]
  %v78 = vld [vmem:[%s1 + $0x38] sm:$0xf]
  %v79 = vld [vmem:[%s1 + $0x3c] sm:$0xf]
  %v80 = vld [vmem:[%s1 + $0x40] sm:$0xf]
  %v81 = vld [vmem:[%s1 + $0x44] sm:$0xf]
  %v82 = vld [vmem:[%s1 + $0x48] sm:$0xf]
  %v83 = vld [vmem:[%s1 + $0x4c] sm:$0xf]
  %v84 = vld [vmem:[%s1 + $0x50] sm:$0xf]
  %v85 = vld [vmem:[%s1 + $0x54] sm:$0xf]
  %v86 = vld [vmem:[%s1 + $0x58] sm:$0xf]
  %v87 = vld [vmem:[%s1 + $0x5c] sm:$0xf]
  %v88 = vld [vmem:[%s1 + $0x60] sm:$0xf]
  %v89 = vld [vmem:[%s2] sm:$0xf]
  %v90 = vld [vmem:[%s2 + $0x4] sm:$0xf]
  %v91 = vld [vmem:[%s2 + $0x8] sm:$0xf]
  %v92 = vld [vmem:[%s2 + $0xc] sm:$0xf]
  %v93 = vld [vmem:[%s3] sm:$0xf]
  %v94 = vld [vmem:[%s3 + $0x4] sm:$0xf]
  %v120 = vunpack.c.l.b16 %v64
  %v121 = vunpack.c.l.b16 %v65
  %v122 = vunpack.c.l.b16 %v66
  %v123 = vunpack.c.l.b16 %v67
  %v124 = vunpack.c.l.b16 %v68
  %v125 = vunpack.c.l.b16 %v69
  %v126 = vunpack.c.l.b16 %v70
  %v127 = vunpack.c.l.b16 %v71
  %v128 = vunpack.c.l.b16 %v72
  %v129 = vunpack.c.l.b16 %v73
  %v130 = vunpack.c.l.b16 %v74
  %v131 = vunpack.c.l.b16 %v75
  %v132 = vunpack.c.l.b16 %v76
  %v133 = vunpack.c.l.b16 %v77
  %v134 = vunpack.c.l.b16 %v78
  %v135 = vunpack.c.l.b16 %v79
  %v136 = vunpack.c.l.b16 %v80
  %v137 = vunpack.c.l.b16 %v81
  %v138 = vunpack.c.l.b16 %v82
  %v139 = vunpack.c.l.b16 %v83
  %v140 = vunpack.c.l.b16 %v84
  %v141 = vunpack.c.l.b16 %v85
  %v142 = vunpack.c.l.b16 %v86
  %v143 = vunpack.c.l.b16 %v87
  %v144 = vunpack.c.l.b16 %v88
  %v145 = vpack.c.b16 %v121, %v120
  %v146 = vpack.c.b16 %v123, %v122
  %v147 = vpack.c.b16 %v125, %v124
  %v148 = vpack.c.b16 %v127, %v126
  %v149 = vpack.c.b16 %v129, %v128
  %v150 = vpack.c.b16 %v131, %v130
  %v151 = vpack.c.b16 %v133, %v132
  %v152 = vpack.c.b16 %v135, %v134
  %v153 = vpack.c.b16 %v137, %v136
  %v154 = vpack.c.b16 %v139, %v138
  %v155 = vpack.c.b16 %v141, %v140
  %v156 = vpack.c.b16 %v143, %v142
  %v157 = vpack.c.b16 %v144, %v144
  %v160 = vunpack.c.l.b16 %v93
  %v161 = vunpack.c.l.b16 %v94
  %v162 = vpack.c.b16 %v161, %v160
  %vm164 = vcmask 130048
  %v166 = vsel %vm164, %v145, 0
  %v169 = vsel %vm164, %v146, 0
  %v172 = vsel %vm164, %v147, 0
  %v175 = vsel %vm164, %v148, 0
  %v178 = vsel %vm164, %v149, 0
  %v181 = vsel %vm164, %v150, 0
  %v184 = vsel %vm164, %v151, 0
  %v187 = vsel %vm164, %v152, 0
  %v190 = vsel %vm164, %v153, 0
  %v193 = vsel %vm164, %v154, 0
  %v196 = vsel %vm164, %v155, 0
  %v199 = vsel %vm164, %v156, 0
  %v202 = vsel %vm164, %v157, 0
  %204 = vmatprep.subr.bf16.mxu0 0
  %205 = vmatpush1.bf16.msra.mxu0 0
  %206 = vmatprep.subr.bf16.mxu0 0
  %207 = vmatpush1.bf16.msra.mxu0 0
  %208 = vmatprep.subr.bf16.mxu0 0
  %209 = vmatpush1.bf16.msra.mxu0 0
  %210 = vmatprep.subr.bf16.mxu0 0
  %211 = vmatpush1.bf16.msra.mxu0 0
  %212 = vmatprep.subr.bf16.mxu0 0
  %213 = vmatpush1.bf16.msra.mxu0 0
  %214 = vmatprep.subr.bf16.mxu0 0
  %215 = vmatpush1.bf16.msra.mxu0 0
  %216 = vmatprep.subr.bf16.mxu0 0
  %217 = vmatpush1.bf16.msra.mxu0 0
  %218 = vmatprep.subr.bf16.mxu0 0
  %219 = vmatpush1.bf16.msra.mxu0 %v162
  %220 = vmatprep.subr.bf16.mxu0 0
  %221 = vmatpush2.bf16.msra.mxu0 0
  %222 = vmatprep.subr.bf16.mxu0 0
  %223 = vmatpush2.bf16.msra.mxu0 0
  %224 = vmatprep.subr.bf16.mxu0 0
  %225 = vmatpush2.bf16.msra.mxu0 0
  %226 = vmatprep.subr.bf16.mxu0 0
  %227 = vmatpush2.bf16.msra.mxu0 0
  %228 = vmatprep.subr.bf16.mxu0 0
  %229 = vmatpush2.bf16.msra.mxu0 0
  %230 = vmatprep.subr.bf16.mxu0 0
  %231 = vmatpush2.bf16.msra.mxu0 0
  %232 = vmatprep.subr.bf16.mxu0 0
  %233 = vmatpush2.bf16.msra.mxu0 0
  %234 = vmatprep.subr.bf16.mxu0 0
  %235 = vmatpush2.bf16.msra.mxu0 0
  %236 = vmatprep.mubr.bf16.mxu0 0
  %237 = vmatmul.mubr.bf16.gmra.mxu0 %v166
  %v238 = vpop.f32.mrf.mxu0
  %v239 = vadd.f32 0.0, %v238
  %v240 = vpop.f32.mrf.mxu0
  %v241 = vpop.f32.mrf.mxu0
  %v242 = vadd.f32 0.0, %v241
  %v243 = vpop.f32.mrf.mxu0
  %244 = vmatprep.mubr.bf16.mxu0 0
  %245 = vmatmul.mubr.bf16.gmra.mxu0 %v169
  %v246 = vpop.f32.mrf.mxu0
  %v247 = vadd.f32 0.0, %v246
  %v248 = vpop.f32.mrf.mxu0
  %v249 = vpop.f32.mrf.mxu0
  %v250 = vadd.f32 0.0, %v249
  %v251 = vpop.f32.mrf.mxu0
  %252 = vmatprep.mubr.bf16.mxu0 0
  %253 = vmatmul.mubr.bf16.gmra.mxu0 %v172
  %v254 = vpop.f32.mrf.mxu0
  %v255 = vadd.f32 0.0, %v254
  %v256 = vpop.f32.mrf.mxu0
  %v257 = vpop.f32.mrf.mxu0
  %v258 = vadd.f32 0.0, %v257
  %v259 = vpop.f32.mrf.mxu0
  %260 = vmatprep.mubr.bf16.mxu0 0
  %261 = vmatmul.mubr.bf16.gmra.mxu0 %v175
  %v262 = vpop.f32.mrf.mxu0
  %v263 = vadd.f32 0.0, %v262
  %v264 = vpop.f32.mrf.mxu0
  %v265 = vpop.f32.mrf.mxu0
  %v266 = vadd.f32 0.0, %v265
  %v267 = vpop.f32.mrf.mxu0
  %268 = vmatprep.mubr.bf16.mxu0 0
  %269 = vmatmul.mubr.bf16.gmra.mxu0 %v178
  %v270 = vpop.f32.mrf.mxu0
  %v271 = vadd.f32 0.0, %v270
  %v272 = vpop.f32.mrf.mxu0
  %v273 = vpop.f32.mrf.mxu0
  %v274 = vadd.f32 0.0, %v273
  %v275 = vpop.f32.mrf.mxu0
  %276 = vmatprep.mubr.bf16.mxu0 0
  %277 = vmatmul.mubr.bf16.gmra.mxu0 %v181
  %v278 = vpop.f32.mrf.mxu0
  %v279 = vadd.f32 0.0, %v278
  %v280 = vpop.f32.mrf.mxu0
  %v281 = vpop.f32.mrf.mxu0
  %v282 = vadd.f32 0.0, %v281
  %v283 = vpop.f32.mrf.mxu0
  %284 = vmatprep.mubr.bf16.mxu0 0
  %285 = vmatmul.mubr.bf16.gmra.mxu0 %v184
  %v286 = vpop.f32.mrf.mxu0
  %v287 = vadd.f32 0.0, %v286
  %v288 = vpop.f32.mrf.mxu0
  %v289 = vpop.f32.mrf.mxu0
  %v290 = vadd.f32 0.0, %v289
  %v291 = vpop.f32.mrf.mxu0
  %292 = vmatprep.mubr.bf16.mxu0 0
  %293 = vmatmul.mubr.bf16.gmra.mxu0 %v187
  %v294 = vpop.f32.mrf.mxu0
  %v295 = vadd.f32 0.0, %v294
  %v296 = vpop.f32.mrf.mxu0
  %v297 = vpop.f32.mrf.mxu0
  %v298 = vadd.f32 0.0, %v297
  %v299 = vpop.f32.mrf.mxu0
  %300 = vmatprep.mubr.bf16.mxu0 0
  %301 = vmatmul.mubr.bf16.gmra.mxu0 %v190
  %v302 = vpop.f32.mrf.mxu0
  %v303 = vadd.f32 0.0, %v302
  %v304 = vpop.f32.mrf.mxu0
  %v305 = vpop.f32.mrf.mxu0
  %v306 = vadd.f32 0.0, %v305
  %v307 = vpop.f32.mrf.mxu0
  %308 = vmatprep.mubr.bf16.mxu0 0
  %309 = vmatmul.mubr.bf16.gmra.mxu0 %v193
  %v310 = vpop.f32.mrf.mxu0
  %v311 = vadd.f32 0.0, %v310
  %v312 = vpop.f32.mrf.mxu0
  %v313 = vpop.f32.mrf.mxu0
  %v314 = vadd.f32 0.0, %v313
  %v315 = vpop.f32.mrf.mxu0
  %316 = vmatprep.mubr.bf16.mxu0 0
  %317 = vmatmul.mubr.bf16.gmra.mxu0 %v196
  %v318 = vpop.f32.mrf.mxu0
  %v319 = vadd.f32 0.0, %v318
  %v320 = vpop.f32.mrf.mxu0
  %v321 = vpop.f32.mrf.mxu0
  %v322 = vadd.f32 0.0, %v321
  %v323 = vpop.f32.mrf.mxu0
  %324 = vmatprep.mubr.bf16.mxu0 0
  %325 = vmatmul.mubr.bf16.gmra.mxu0 %v199
  %v326 = vpop.f32.mrf.mxu0
  %v327 = vadd.f32 0.0, %v326
  %v328 = vpop.f32.mrf.mxu0
  %v329 = vpop.f32.mrf.mxu0
  %v330 = vadd.f32 0.0, %v329
  %v331 = vpop.f32.mrf.mxu0
  %332 = vmatprep.mubr.bf16.mxu0 0
  %333 = vmatmul.mubr.bf16.gmra.mxu0 %v202
  %v334 = vpop.f32.mrf.mxu0
  %v335 = vadd.f32 0.0, %v334
  %v336 = vpop.f32.mrf.mxu0
  %v337 = vpop.f32.mrf.mxu0
  %v338 = vpop.f32.mrf.mxu0
  %339 = vdwg.mxu0
  %v365 = vunpack.c.l.b16 %v39
  %v366 = vunpack.c.l.b16 %v40
  %v367 = vunpack.c.l.b16 %v41
  %v368 = vunpack.c.l.b16 %v42
  %v369 = vunpack.c.l.b16 %v43
  %v370 = vunpack.c.l.b16 %v44
  %v371 = vunpack.c.l.b16 %v45
  %v372 = vunpack.c.l.b16 %v46
  %v373 = vunpack.c.l.b16 %v47
  %v374 = vunpack.c.l.b16 %v48
  %v375 = vunpack.c.l.b16 %v49
  %v376 = vunpack.c.l.b16 %v50
  %v377 = vunpack.c.l.b16 %v51
  %v378 = vunpack.c.l.b16 %v52
  %v379 = vunpack.c.l.b16 %v53
  %v380 = vunpack.c.l.b16 %v54
  %v381 = vunpack.c.l.b16 %v55
  %v382 = vunpack.c.l.b16 %v56
  %v383 = vunpack.c.l.b16 %v57
  %v384 = vunpack.c.l.b16 %v58
  %v385 = vunpack.c.l.b16 %v59
  %v386 = vunpack.c.l.b16 %v60
  %v387 = vunpack.c.l.b16 %v61
  %v388 = vunpack.c.l.b16 %v62
  %v389 = vunpack.c.l.b16 %v63
  %v390 = vpack.c.b16 %v366, %v365
  %v391 = vpack.c.b16 %v368, %v367
  %v392 = vpack.c.b16 %v370, %v369
  %v393 = vpack.c.b16 %v372, %v371
  %v394 = vpack.c.b16 %v374, %v373
  %v395 = vpack.c.b16 %v376, %v375
  %v396 = vpack.c.b16 %v378, %v377
  %v397 = vpack.c.b16 %v380, %v379
  %v398 = vpack.c.b16 %v382, %v381
  %v399 = vpack.c.b16 %v384, %v383
  %v400 = vpack.c.b16 %v386, %v385
  %v401 = vpack.c.b16 %v388, %v387
  %v402 = vpack.c.b16 %v389, %v389
  %v407 = vunpack.c.l.b16 %v89
  %v408 = vunpack.c.l.b16 %v90
  %v409 = vunpack.c.l.b16 %v91
  %v410 = vunpack.c.l.b16 %v92
  %v411 = vpack.c.b16 %v408, %v407
  %v412 = vpack.c.b16 %v410, %v409
  %vm415 = vcmask 261120
  %v417 = vsel %vm415, %v390, 0
  %v420 = vsel %vm415, %v391, 0
  %v423 = vsel %vm415, %v392, 0
  %v426 = vsel %vm415, %v393, 0
  %v429 = vsel %vm415, %v394, 0
  %v432 = vsel %vm415, %v395, 0
  %v435 = vsel %vm415, %v396, 0
  %v438 = vsel %vm415, %v397, 0
  %v441 = vsel %vm415, %v398, 0
  %v444 = vsel %vm415, %v399, 0
  %v447 = vsel %vm415, %v400, 0
  %v450 = vsel %vm415, %v401, 0
  %v453 = vsel %vm415, %v402, 0
  %455 = vmatprep.subr.bf16.mxu0 0
  %456 = vmatpush1.bf16.msra.mxu0 0
  %457 = vmatprep.subr.bf16.mxu0 0
  %458 = vmatpush1.bf16.msra.mxu0 0
  %459 = vmatprep.subr.bf16.mxu0 0
  %460 = vmatpush1.bf16.msra.mxu0 0
  %461 = vmatprep.subr.bf16.mxu0 0
  %462 = vmatpush1.bf16.msra.mxu0 0
  %463 = vmatprep.subr.bf16.mxu0 0
  %464 = vmatpush1.bf16.msra.mxu0 0
  %465 = vmatprep.subr.bf16.mxu0 0
  %466 = vmatpush1.bf16.msra.mxu0 0
  %467 = vmatprep.subr.bf16.mxu0 0
  %468 = vmatpush1.bf16.msra.mxu0 %v412
  %469 = vmatprep.subr.bf16.mxu0 0
  %470 = vmatpush1.bf16.msra.mxu0 %v411
  %471 = vmatprep.subr.bf16.mxu0 0
  %472 = vmatpush2.bf16.msra.mxu0 0
  %473 = vmatprep.subr.bf16.mxu0 0
  %474 = vmatpush2.bf16.msra.mxu0 0
  %475 = vmatprep.subr.bf16.mxu0 0
  %476 = vmatpush2.bf16.msra.mxu0 0
  %477 = vmatprep.subr.bf16.mxu0 0
  %478 = vmatpush2.bf16.msra.mxu0 0
  %479 = vmatprep.subr.bf16.mxu0 0
  %480 = vmatpush2.bf16.msra.mxu0 0
  %481 = vmatprep.subr.bf16.mxu0 0
  %482 = vmatpush2.bf16.msra.mxu0 0
  %483 = vmatprep.subr.bf16.mxu0 0
  %484 = vmatpush2.bf16.msra.mxu0 0
  %485 = vmatprep.subr.bf16.mxu0 0
  %486 = vmatpush2.bf16.msra.mxu0 0
  %487 = vmatprep.mubr.bf16.mxu0 0
  %488 = vmatmul.mubr.bf16.gmra.mxu0 %v417
  %v489 = vpop.f32.mrf.mxu0
  %v490 = vadd.f32 %v239, %v489
  %v491 = vpop.f32.mrf.mxu0
  %v492 = vpop.f32.mrf.mxu0
  %v493 = vadd.f32 %v242, %v492
  %v494 = vpop.f32.mrf.mxu0
  %495 = vmatprep.mubr.bf16.mxu0 0
  %496 = vmatmul.mubr.bf16.gmra.mxu0 %v420
  %v497 = vpop.f32.mrf.mxu0
  %v498 = vadd.f32 %v247, %v497
  %v499 = vpop.f32.mrf.mxu0
  %v500 = vpop.f32.mrf.mxu0
  %v501 = vadd.f32 %v250, %v500
  %v502 = vpop.f32.mrf.mxu0
  %503 = vmatprep.mubr.bf16.mxu0 0
  %504 = vmatmul.mubr.bf16.gmra.mxu0 %v423
  %v505 = vpop.f32.mrf.mxu0
  %v506 = vadd.f32 %v255, %v505
  %v507 = vpop.f32.mrf.mxu0
  %v508 = vpop.f32.mrf.mxu0
  %v509 = vadd.f32 %v258, %v508
  %v510 = vpop.f32.mrf.mxu0
  %511 = vmatprep.mubr.bf16.mxu0 0
  %512 = vmatmul.mubr.bf16.gmra.mxu0 %v426
  %v513 = vpop.f32.mrf.mxu0
  %v514 = vadd.f32 %v263, %v513
  %v515 = vpop.f32.mrf.mxu0
  %v516 = vpop.f32.mrf.mxu0
  %v517 = vadd.f32 %v266, %v516
  %v518 = vpop.f32.mrf.mxu0
  %519 = vmatprep.mubr.bf16.mxu0 0
  %520 = vmatmul.mubr.bf16.gmra.mxu0 %v429
  %v521 = vpop.f32.mrf.mxu0
  %v522 = vadd.f32 %v271, %v521
  %v523 = vpop.f32.mrf.mxu0
  %v524 = vpop.f32.mrf.mxu0
  %v525 = vadd.f32 %v274, %v524
  %v526 = vpop.f32.mrf.mxu0
  %527 = vmatprep.mubr.bf16.mxu0 0
  %528 = vmatmul.mubr.bf16.gmra.mxu0 %v432
  %v529 = vpop.f32.mrf.mxu0
  %v530 = vadd.f32 %v279, %v529
  %v531 = vpop.f32.mrf.mxu0
  %v532 = vpop.f32.mrf.mxu0
  %v533 = vadd.f32 %v282, %v532
  %v534 = vpop.f32.mrf.mxu0
  %535 = vmatprep.mubr.bf16.mxu0 0
  %536 = vmatmul.mubr.bf16.gmra.mxu0 %v435
  %v537 = vpop.f32.mrf.mxu0
  %v538 = vadd.f32 %v287, %v537
  %v539 = vpop.f32.mrf.mxu0
  %v540 = vpop.f32.mrf.mxu0
  %v541 = vadd.f32 %v290, %v540
  %v542 = vpop.f32.mrf.mxu0
  %543 = vmatprep.mubr.bf16.mxu0 0
  %544 = vmatmul.mubr.bf16.gmra.mxu0 %v438
  %v545 = vpop.f32.mrf.mxu0
  %v546 = vadd.f32 %v295, %v545
  %v547 = vpop.f32.mrf.mxu0
  %v548 = vpop.f32.mrf.mxu0
  %v549 = vadd.f32 %v298, %v548
  %v550 = vpop.f32.mrf.mxu0
  %551 = vmatprep.mubr.bf16.mxu0 0
  %552 = vmatmul.mubr.bf16.gmra.mxu0 %v441
  %v553 = vpop.f32.mrf.mxu0
  %v554 = vadd.f32 %v303, %v553
  %v555 = vpop.f32.mrf.mxu0
  %v556 = vpop.f32.mrf.mxu0
  %v557 = vadd.f32 %v306, %v556
  %v558 = vpop.f32.mrf.mxu0
  %559 = vmatprep.mubr.bf16.mxu0 0
  %560 = vmatmul.mubr.bf16.gmra.mxu0 %v444
  %v561 = vpop.f32.mrf.mxu0
  %v562 = vadd.f32 %v311, %v561
  %v563 = vpop.f32.mrf.mxu0
  %v564 = vpop.f32.mrf.mxu0
  %v565 = vadd.f32 %v314, %v564
  %v566 = vpop.f32.mrf.mxu0
  %567 = vmatprep.mubr.bf16.mxu0 0
  %568 = vmatmul.mubr.bf16.gmra.mxu0 %v447
  %v569 = vpop.f32.mrf.mxu0
  %v570 = vadd.f32 %v319, %v569
  %v571 = vpop.f32.mrf.mxu0
  %v572 = vpop.f32.mrf.mxu0
  %v573 = vadd.f32 %v322, %v572
  %v574 = vpop.f32.mrf.mxu0
  %575 = vmatprep.mubr.bf16.mxu0 0
  %576 = vmatmul.mubr.bf16.gmra.mxu0 %v450
  %v577 = vpop.f32.mrf.mxu0
  %v578 = vadd.f32 %v327, %v577
  %v579 = vpop.f32.mrf.mxu0
  %v580 = vpop.f32.mrf.mxu0
  %v581 = vadd.f32 %v330, %v580
  %v582 = vpop.f32.mrf.mxu0
  %583 = vmatprep.mubr.bf16.mxu0 0
  %584 = vmatmul.mubr.bf16.gmra.mxu0 %v453
  %v585 = vpop.f32.mrf.mxu0
  %v586 = vadd.f32 %v335, %v585
  %v587 = vpop.f32.mrf.mxu0
  %v588 = vpop.f32.mrf.mxu0
  %v589 = vpop.f32.mrf.mxu0
  %590 = vdwg.mxu0
  %v591 = vld [vmem:[%s4] sm:$0x1]
  %v593 = vlaneseq
  %v594 = vshrl.u32 %v593, 7
  %v595 = vsub.s32 0, %v594
  %v596 = vrot.slane %v591, %v595
  %v598 = vadd.f32 %v490, %v596
  %v599 = vadd.f32 %v493, %v596
  %v600 = vadd.f32 %v498, %v596
  %v601 = vadd.f32 %v501, %v596
  %v602 = vadd.f32 %v506, %v596
  %v603 = vadd.f32 %v509, %v596
  %v604 = vadd.f32 %v514, %v596
  %v605 = vadd.f32 %v517, %v596
  %v606 = vadd.f32 %v522, %v596
  %v607 = vadd.f32 %v525, %v596
  %v608 = vadd.f32 %v530, %v596
  %v609 = vadd.f32 %v533, %v596
  %v610 = vadd.f32 %v538, %v596
  %v611 = vadd.f32 %v541, %v596
  %v612 = vadd.f32 %v546, %v596
  %v613 = vadd.f32 %v549, %v596
  %v614 = vadd.f32 %v554, %v596
  %v615 = vadd.f32 %v557, %v596
  %v616 = vadd.f32 %v562, %v596
  %v617 = vadd.f32 %v565, %v596
  %v618 = vadd.f32 %v570, %v596
  %v619 = vadd.f32 %v573, %v596
  %v620 = vadd.f32 %v578, %v596
  %v621 = vadd.f32 %v581, %v596
  %v622 = vadd.f32 %v586, %v596
  %v623 = vxor.u32 %v598, 2147483648
  %v624 = vxor.u32 %v599, 2147483648
  %v625 = vxor.u32 %v600, 2147483648
  %v626 = vxor.u32 %v601, 2147483648
  %v627 = vxor.u32 %v602, 2147483648
  %v628 = vxor.u32 %v603, 2147483648
  %v629 = vxor.u32 %v604, 2147483648
  %v630 = vxor.u32 %v605, 2147483648
  %v631 = vxor.u32 %v606, 2147483648
  %v632 = vxor.u32 %v607, 2147483648
  %v633 = vxor.u32 %v608, 2147483648
  %v634 = vxor.u32 %v609, 2147483648
  %v635 = vxor.u32 %v610, 2147483648
  %v636 = vxor.u32 %v611, 2147483648
  %v637 = vxor.u32 %v612, 2147483648
  %v638 = vxor.u32 %v613, 2147483648
  %v639 = vxor.u32 %v614, 2147483648
  %v640 = vxor.u32 %v615, 2147483648
  %v641 = vxor.u32 %v616, 2147483648
  %v642 = vxor.u32 %v617, 2147483648
  %v643 = vxor.u32 %v618, 2147483648
  %v644 = vxor.u32 %v619, 2147483648
  %v645 = vxor.u32 %v620, 2147483648
  %v646 = vxor.u32 %v621, 2147483648
  %v647 = vxor.u32 %v622, 2147483648
  %v648 = vmul.f32 %v623, 1.442695
  %v649 = vpow.pop %v648
  %v650 = vmul.f32 %v624, 1.442695
  %v651 = vpow.pop %v650
  %v652 = vmul.f32 %v625, 1.442695
  %v653 = vpow.pop %v652
  %v654 = vmul.f32 %v626, 1.442695
  %v655 = vpow.pop %v654
  %v656 = vmul.f32 %v627, 1.442695
  %v657 = vpow.pop %v656
  %v658 = vmul.f32 %v628, 1.442695
  %v659 = vpow.pop %v658
  %v660 = vmul.f32 %v629, 1.442695
  %v661 = vpow.pop %v660
  %v662 = vmul.f32 %v630, 1.442695
  %v663 = vpow.pop %v662
  %v664 = vmul.f32 %v631, 1.442695
  %v665 = vpow.pop %v664
  %v666 = vmul.f32 %v632, 1.442695
  %v667 = vpow.pop %v666
  %v668 = vmul.f32 %v633, 1.442695
  %v669 = vpow.pop %v668
  %v670 = vmul.f32 %v634, 1.442695
  %v671 = vpow.pop %v670
  %v672 = vmul.f32 %v635, 1.442695
  %v673 = vpow.pop %v672
  %v674 = vmul.f32 %v636, 1.442695
  %v675 = vpow.pop %v674
  %v676 = vmul.f32 %v637, 1.442695
  %v677 = vpow.pop %v676
  %v678 = vmul.f32 %v638, 1.442695
  %v679 = vpow.pop %v678
  %v680 = vmul.f32 %v639, 1.442695
  %v681 = vpow.pop %v680
  %v682 = vmul.f32 %v640, 1.442695
  %v683 = vpow.pop %v682
  %v684 = vmul.f32 %v641, 1.442695
  %v685 = vpow.pop %v684
  %v686 = vmul.f32 %v642, 1.442695
  %v687 = vpow.pop %v686
  %v688 = vmul.f32 %v643, 1.442695
  %v689 = vpow.pop %v688
  %v690 = vmul.f32 %v644, 1.442695
  %v691 = vpow.pop %v690
  %v692 = vmul.f32 %v645, 1.442695
  %v693 = vpow.pop %v692
  %v694 = vmul.f32 %v646, 1.442695
  %v695 = vpow.pop %v694
  %v696 = vmul.f32 %v647, 1.442695
  %v697 = vpow.pop %v696
  %v698 = vadd.f32 %v649, 1.0
  %v699 = vadd.f32 %v651, 1.0
  %v700 = vadd.f32 %v653, 1.0
  %v701 = vadd.f32 %v655, 1.0
  %v702 = vadd.f32 %v657, 1.0
  %v703 = vadd.f32 %v659, 1.0
  %v704 = vadd.f32 %v661, 1.0
  %v705 = vadd.f32 %v663, 1.0
  %v706 = vadd.f32 %v665, 1.0
  %v707 = vadd.f32 %v667, 1.0
  %v708 = vadd.f32 %v669, 1.0
  %v709 = vadd.f32 %v671, 1.0
  %v710 = vadd.f32 %v673, 1.0
  %v711 = vadd.f32 %v675, 1.0
  %v712 = vadd.f32 %v677, 1.0
  %v713 = vadd.f32 %v679, 1.0
  %v714 = vadd.f32 %v681, 1.0
  %v715 = vadd.f32 %v683, 1.0
  %v716 = vadd.f32 %v685, 1.0
  %v717 = vadd.f32 %v687, 1.0
  %v718 = vadd.f32 %v689, 1.0
  %v719 = vadd.f32 %v691, 1.0
  %v720 = vadd.f32 %v693, 1.0
  %v721 = vadd.f32 %v695, 1.0
  %v722 = vadd.f32 %v697, 1.0
  %v723 = vrcp.pop %v698
  %v724 = vmul.f32 1.0, %v723
  %v725 = vrcp.pop %v699
  %v726 = vmul.f32 1.0, %v725
  %v727 = vrcp.pop %v700
  %v728 = vmul.f32 1.0, %v727
  %v729 = vrcp.pop %v701
  %v730 = vmul.f32 1.0, %v729
  %v731 = vrcp.pop %v702
  %v732 = vmul.f32 1.0, %v731
  %v733 = vrcp.pop %v703
  %v734 = vmul.f32 1.0, %v733
  %v735 = vrcp.pop %v704
  %v736 = vmul.f32 1.0, %v735
  %v737 = vrcp.pop %v705
  %v738 = vmul.f32 1.0, %v737
  %v739 = vrcp.pop %v706
  %v740 = vmul.f32 1.0, %v739
  %v741 = vrcp.pop %v707
  %v742 = vmul.f32 1.0, %v741
  %v743 = vrcp.pop %v708
  %v744 = vmul.f32 1.0, %v743
  %v745 = vrcp.pop %v709
  %v746 = vmul.f32 1.0, %v745
  %v747 = vrcp.pop %v710
  %v748 = vmul.f32 1.0, %v747
  %v749 = vrcp.pop %v711
  %v750 = vmul.f32 1.0, %v749
  %v751 = vrcp.pop %v712
  %v752 = vmul.f32 1.0, %v751
  %v753 = vrcp.pop %v713
  %v754 = vmul.f32 1.0, %v753
  %v755 = vrcp.pop %v714
  %v756 = vmul.f32 1.0, %v755
  %v757 = vrcp.pop %v715
  %v758 = vmul.f32 1.0, %v757
  %v759 = vrcp.pop %v716
  %v760 = vmul.f32 1.0, %v759
  %v761 = vrcp.pop %v717
  %v762 = vmul.f32 1.0, %v761
  %v763 = vrcp.pop %v718
  %v764 = vmul.f32 1.0, %v763
  %v765 = vrcp.pop %v719
  %v766 = vmul.f32 1.0, %v765
  %v767 = vrcp.pop %v720
  %v768 = vmul.f32 1.0, %v767
  %v769 = vrcp.pop %v721
  %v770 = vmul.f32 1.0, %v769
  %v771 = vrcp.pop %v722
  %v772 = vmul.f32 1.0, %v771
  %v773 = vmul.f32 %v598, %v724
  %v774 = vmul.f32 %v599, %v726
  %v775 = vmul.f32 %v600, %v728
  %v776 = vmul.f32 %v601, %v730
  %v777 = vmul.f32 %v602, %v732
  %v778 = vmul.f32 %v603, %v734
  %v779 = vmul.f32 %v604, %v736
  %v780 = vmul.f32 %v605, %v738
  %v781 = vmul.f32 %v606, %v740
  %v782 = vmul.f32 %v607, %v742
  %v783 = vmul.f32 %v608, %v744
  %v784 = vmul.f32 %v609, %v746
  %v785 = vmul.f32 %v610, %v748
  %v786 = vmul.f32 %v611, %v750
  %v787 = vmul.f32 %v612, %v752
  %v788 = vmul.f32 %v613, %v754
  %v789 = vmul.f32 %v614, %v756
  %v790 = vmul.f32 %v615, %v758
  %v791 = vmul.f32 %v616, %v760
  %v792 = vmul.f32 %v617, %v762
  %v793 = vmul.f32 %v618, %v764
  %v794 = vmul.f32 %v619, %v766
  %v795 = vmul.f32 %v620, %v768
  %v796 = vmul.f32 %v621, %v770
  %v797 = vmul.f32 %v622, %v772
  %v798 = vpack.c.bf16 %v774, %v773
  %v799 = vpack.c.bf16 %v776, %v775
  %v800 = vpack.c.bf16 %v778, %v777
  %v801 = vpack.c.bf16 %v780, %v779
  %v802 = vpack.c.bf16 %v782, %v781
  %v803 = vpack.c.bf16 %v784, %v783
  %v804 = vpack.c.bf16 %v786, %v785
  %v805 = vpack.c.bf16 %v788, %v787
  %v806 = vpack.c.bf16 %v790, %v789
  %v807 = vpack.c.bf16 %v792, %v791
  %v808 = vpack.c.bf16 %v794, %v793
  %v809 = vpack.c.bf16 %v796, %v795
  %v810 = vpack.c.bf16 %v797, %v797
  %v811 = vld [vmem:[%s5] sm:$0xf]
  %v812 = vld [vmem:[%s5 + $0x4] sm:$0xf]
  %v813 = vld [vmem:[%s5 + $0x8] sm:$0xf]
  %v814 = vld [vmem:[%s5 + $0xc] sm:$0xf]
  %v815 = vld [vmem:[%s5 + $0x10] sm:$0xf]
  %v816 = vld [vmem:[%s5 + $0x14] sm:$0xf]
  %v817 = vld [vmem:[%s5 + $0x18] sm:$0xf]
  %v818 = vld [vmem:[%s5 + $0x1c] sm:$0xf]
  %v819 = vld [vmem:[%s6] sm:$0xf]
  %v820 = vld [vmem:[%s6 + $0x4] sm:$0xf]
  %v823 = vunpack.c.l.b16 %v819
  %v824 = vunpack.c.l.b16 %v820
  %v825 = vpack.c.b16 %v824, %v823
  %827 = vmatprep.subr.bf16.mxu0 0
  %828 = vmatpush1.bf16.msra.mxu0 0
  %829 = vmatprep.subr.bf16.mxu0 0
  %830 = vmatpush1.bf16.msra.mxu0 0
  %831 = vmatprep.subr.bf16.mxu0 0
  %832 = vmatpush1.bf16.msra.mxu0 0
  %833 = vmatprep.subr.bf16.mxu0 0
  %834 = vmatpush1.bf16.msra.mxu0 0
  %835 = vmatprep.subr.bf16.mxu0 0
  %836 = vmatpush1.bf16.msra.mxu0 0
  %837 = vmatprep.subr.bf16.mxu0 0
  %838 = vmatpush1.bf16.msra.mxu0 0
  %839 = vmatprep.subr.bf16.mxu0 0
  %840 = vmatpush1.bf16.msra.mxu0 0
  %841 = vmatprep.subr.bf16.mxu0 0
  %842 = vmatpush1.bf16.msra.mxu0 %v825
  %843 = vmatprep.subr.bf16.mxu0 0
  %844 = vmatpush2.bf16.msra.mxu0 0
  %845 = vmatprep.subr.bf16.mxu0 0
  %846 = vmatpush2.bf16.msra.mxu0 0
  %847 = vmatprep.subr.bf16.mxu0 0
  %848 = vmatpush2.bf16.msra.mxu0 0
  %849 = vmatprep.subr.bf16.mxu0 0
  %850 = vmatpush2.bf16.msra.mxu0 0
  %851 = vmatprep.subr.bf16.mxu0 0
  %852 = vmatpush2.bf16.msra.mxu0 0
  %853 = vmatprep.subr.bf16.mxu0 0
  %854 = vmatpush2.bf16.msra.mxu0 0
  %855 = vmatprep.subr.bf16.mxu0 0
  %856 = vmatpush2.bf16.msra.mxu0 0
  %857 = vmatprep.subr.bf16.mxu0 0
  %858 = vmatpush2.bf16.msra.mxu0 0
  %859 = vmatprep.mubr.bf16.mxu0 0
  %860 = vmatmul.mubr.bf16.gmra.mxu0 %v166
  %v861 = vpop.f32.mrf.mxu0
  %v862 = vadd.f32 0.0, %v861
  %v863 = vpop.f32.mrf.mxu0
  %v864 = vpop.f32.mrf.mxu0
  %v865 = vadd.f32 0.0, %v864
  %v866 = vpop.f32.mrf.mxu0
  %867 = vmatprep.mubr.bf16.mxu0 0
  %868 = vmatmul.mubr.bf16.gmra.mxu0 %v169
  %v869 = vpop.f32.mrf.mxu0
  %v870 = vadd.f32 0.0, %v869
  %v871 = vpop.f32.mrf.mxu0
  %v872 = vpop.f32.mrf.mxu0
  %v873 = vadd.f32 0.0, %v872
  %v874 = vpop.f32.mrf.mxu0
  %875 = vmatprep.mubr.bf16.mxu0 0
  %876 = vmatmul.mubr.bf16.gmra.mxu0 %v172
  %v877 = vpop.f32.mrf.mxu0
  %v878 = vadd.f32 0.0, %v877
  %v879 = vpop.f32.mrf.mxu0
  %v880 = vpop.f32.mrf.mxu0
  %v881 = vadd.f32 0.0, %v880
  %v882 = vpop.f32.mrf.mxu0
  %883 = vmatprep.mubr.bf16.mxu0 0
  %884 = vmatmul.mubr.bf16.gmra.mxu0 %v175
  %v885 = vpop.f32.mrf.mxu0
  %v886 = vadd.f32 0.0, %v885
  %v887 = vpop.f32.mrf.mxu0
  %v888 = vpop.f32.mrf.mxu0
  %v889 = vadd.f32 0.0, %v888
  %v890 = vpop.f32.mrf.mxu0
  %891 = vmatprep.mubr.bf16.mxu0 0
  %892 = vmatmul.mubr.bf16.gmra.mxu0 %v178
  %v893 = vpop.f32.mrf.mxu0
  %v894 = vadd.f32 0.0, %v893
  %v895 = vpop.f32.mrf.mxu0
  %v896 = vpop.f32.mrf.mxu0
  %v897 = vadd.f32 0.0, %v896
  %v898 = vpop.f32.mrf.mxu0
  %899 = vmatprep.mubr.bf16.mxu0 0
  %900 = vmatmul.mubr.bf16.gmra.mxu0 %v181
  %v901 = vpop.f32.mrf.mxu0
  %v902 = vadd.f32 0.0, %v901
  %v903 = vpop.f32.mrf.mxu0
  %v904 = vpop.f32.mrf.mxu0
  %v905 = vadd.f32 0.0, %v904
  %v906 = vpop.f32.mrf.mxu0
  %907 = vmatprep.mubr.bf16.mxu0 0
  %908 = vmatmul.mubr.bf16.gmra.mxu0 %v184
  %v909 = vpop.f32.mrf.mxu0
  %v910 = vadd.f32 0.0, %v909
  %v911 = vpop.f32.mrf.mxu0
  %v912 = vpop.f32.mrf.mxu0
  %v913 = vadd.f32 0.0, %v912
  %v914 = vpop.f32.mrf.mxu0
  %915 = vmatprep.mubr.bf16.mxu0 0
  %916 = vmatmul.mubr.bf16.gmra.mxu0 %v187
  %v917 = vpop.f32.mrf.mxu0
  %v918 = vadd.f32 0.0, %v917
  %v919 = vpop.f32.mrf.mxu0
  %v920 = vpop.f32.mrf.mxu0
  %v921 = vadd.f32 0.0, %v920
  %v922 = vpop.f32.mrf.mxu0
  %923 = vmatprep.mubr.bf16.mxu0 0
  %924 = vmatmul.mubr.bf16.gmra.mxu0 %v190
  %v925 = vpop.f32.mrf.mxu0
  %v926 = vadd.f32 0.0, %v925
  %v927 = vpop.f32.mrf.mxu0
  %v928 = vpop.f32.mrf.mxu0
  %v929 = vadd.f32 0.0, %v928
  %v930 = vpop.f32.mrf.mxu0
  %931 = vmatprep.mubr.bf16.mxu0 0
  %932 = vmatmul.mubr.bf16.gmra.mxu0 %v193
  %v933 = vpop.f32.mrf.mxu0
  %v934 = vadd.f32 0.0, %v933
  %v935 = vpop.f32.mrf.mxu0
  %v936 = vpop.f32.mrf.mxu0
  %v937 = vadd.f32 0.0, %v936
  %v938 = vpop.f32.mrf.mxu0
  %939 = vmatprep.mubr.bf16.mxu0 0
  %940 = vmatmul.mubr.bf16.gmra.mxu0 %v196
  %v941 = vpop.f32.mrf.mxu0
  %v942 = vadd.f32 0.0, %v941
  %v943 = vpop.f32.mrf.mxu0
  %v944 = vpop.f32.mrf.mxu0
  %v945 = vadd.f32 0.0, %v944
  %v946 = vpop.f32.mrf.mxu0
  %947 = vmatprep.mubr.bf16.mxu0 0
  %948 = vmatmul.mubr.bf16.gmra.mxu0 %v199
  %v949 = vpop.f32.mrf.mxu0
  %v950 = vadd.f32 0.0, %v949
  %v951 = vpop.f32.mrf.mxu0
  %v952 = vpop.f32.mrf.mxu0
  %v953 = vadd.f32 0.0, %v952
  %v954 = vpop.f32.mrf.mxu0
  %955 = vmatprep.mubr.bf16.mxu0 0
  %956 = vmatmul.mubr.bf16.gmra.mxu0 %v202
  %v957 = vpop.f32.mrf.mxu0
  %v958 = vadd.f32 0.0, %v957
  %v959 = vpop.f32.mrf.mxu0
  %v960 = vpop.f32.mrf.mxu0
  %v961 = vpop.f32.mrf.mxu0
  %962 = vdwg.mxu0
  %v971 = vunpack.c.l.b16 %v811
  %v972 = vunpack.c.l.b16 %v812
  %v973 = vunpack.c.l.b16 %v813
  %v974 = vunpack.c.l.b16 %v814
  %v975 = vunpack.c.l.b16 %v815
  %v976 = vunpack.c.l.b16 %v816
  %v977 = vunpack.c.l.b16 %v817
  %v978 = vunpack.c.l.b16 %v818
  %v979 = vpack.c.b16 %v972, %v971
  %v980 = vpack.c.b16 %v974, %v973
  %v981 = vpack.c.b16 %v976, %v975
  %v982 = vpack.c.b16 %v978, %v977
  %vm987 = vcmask 523264
  %v989 = vsel %vm987, %v798, 0
  %v992 = vsel %vm987, %v799, 0
  %v995 = vsel %vm987, %v800, 0
  %v998 = vsel %vm987, %v801, 0
  %v1001 = vsel %vm987, %v802, 0
  %v1004 = vsel %vm987, %v803, 0
  %v1007 = vsel %vm987, %v804, 0
  %v1010 = vsel %vm987, %v805, 0
  %v1013 = vsel %vm987, %v806, 0
  %v1016 = vsel %vm987, %v807, 0
  %v1019 = vsel %vm987, %v808, 0
  %v1022 = vsel %vm987, %v809, 0
  %v1025 = vsel %vm987, %v810, 0
  %1027 = vmatprep.subr.bf16.mxu0 0
  %1028 = vmatpush1.bf16.msra.mxu0 0
  %1029 = vmatprep.subr.bf16.mxu0 0
  %1030 = vmatpush1.bf16.msra.mxu0 0
  %1031 = vmatprep.subr.bf16.mxu0 0
  %1032 = vmatpush1.bf16.msra.mxu0 0
  %1033 = vmatprep.subr.bf16.mxu0 0
  %1034 = vmatpush1.bf16.msra.mxu0 0
  %1035 = vmatprep.subr.bf16.mxu0 0
  %1036 = vmatpush1.bf16.msra.mxu0 %v982
  %1037 = vmatprep.subr.bf16.mxu0 0
  %1038 = vmatpush1.bf16.msra.mxu0 %v981
  %1039 = vmatprep.subr.bf16.mxu0 0
  %1040 = vmatpush1.bf16.msra.mxu0 %v980
  %1041 = vmatprep.subr.bf16.mxu0 0
  %1042 = vmatpush1.bf16.msra.mxu0 %v979
  %1043 = vmatprep.subr.bf16.mxu0 0
  %1044 = vmatpush2.bf16.msra.mxu0 0
  %1045 = vmatprep.subr.bf16.mxu0 0
  %1046 = vmatpush2.bf16.msra.mxu0 0
  %1047 = vmatprep.subr.bf16.mxu0 0
  %1048 = vmatpush2.bf16.msra.mxu0 0
  %1049 = vmatprep.subr.bf16.mxu0 0
  %1050 = vmatpush2.bf16.msra.mxu0 0
  %1051 = vmatprep.subr.bf16.mxu0 0
  %1052 = vmatpush2.bf16.msra.mxu0 0
  %1053 = vmatprep.subr.bf16.mxu0 0
  %1054 = vmatpush2.bf16.msra.mxu0 0
  %1055 = vmatprep.subr.bf16.mxu0 0
  %1056 = vmatpush2.bf16.msra.mxu0 0
  %1057 = vmatprep.subr.bf16.mxu0 0
  %1058 = vmatpush2.bf16.msra.mxu0 0
  %1059 = vmatprep.mubr.bf16.mxu0 0
  %1060 = vmatmul.mubr.bf16.gmra.mxu0 %v989
  %v1061 = vpop.f32.mrf.mxu0
  %v1062 = vadd.f32 %v862, %v1061
  %v1063 = vpop.f32.mrf.mxu0
  %v1064 = vpop.f32.mrf.mxu0
  %v1065 = vadd.f32 %v865, %v1064
  %v1066 = vpop.f32.mrf.mxu0
  %1067 = vmatprep.mubr.bf16.mxu0 0
  %1068 = vmatmul.mubr.bf16.gmra.mxu0 %v992
  %v1069 = vpop.f32.mrf.mxu0
  %v1070 = vadd.f32 %v870, %v1069
  %v1071 = vpop.f32.mrf.mxu0
  %v1072 = vpop.f32.mrf.mxu0
  %v1073 = vadd.f32 %v873, %v1072
  %v1074 = vpop.f32.mrf.mxu0
  %1075 = vmatprep.mubr.bf16.mxu0 0
  %1076 = vmatmul.mubr.bf16.gmra.mxu0 %v995
  %v1077 = vpop.f32.mrf.mxu0
  %v1078 = vadd.f32 %v878, %v1077
  %v1079 = vpop.f32.mrf.mxu0
  %v1080 = vpop.f32.mrf.mxu0
  %v1081 = vadd.f32 %v881, %v1080
  %v1082 = vpop.f32.mrf.mxu0
  %1083 = vmatprep.mubr.bf16.mxu0 0
  %1084 = vmatmul.mubr.bf16.gmra.mxu0 %v998
  %v1085 = vpop.f32.mrf.mxu0
  %v1086 = vadd.f32 %v886, %v1085
  %v1087 = vpop.f32.mrf.mxu0
  %v1088 = vpop.f32.mrf.mxu0
  %v1089 = vadd.f32 %v889, %v1088
  %v1090 = vpop.f32.mrf.mxu0
  %1091 = vmatprep.mubr.bf16.mxu0 0
  %1092 = vmatmul.mubr.bf16.gmra.mxu0 %v1001
  %v1093 = vpop.f32.mrf.mxu0
  %v1094 = vadd.f32 %v894, %v1093
  %v1095 = vpop.f32.mrf.mxu0
  %v1096 = vpop.f32.mrf.mxu0
  %v1097 = vadd.f32 %v897, %v1096
  %v1098 = vpop.f32.mrf.mxu0
  %1099 = vmatprep.mubr.bf16.mxu0 0
  %1100 = vmatmul.mubr.bf16.gmra.mxu0 %v1004
  %v1101 = vpop.f32.mrf.mxu0
  %v1102 = vadd.f32 %v902, %v1101
  %v1103 = vpop.f32.mrf.mxu0
  %v1104 = vpop.f32.mrf.mxu0
  %v1105 = vadd.f32 %v905, %v1104
  %v1106 = vpop.f32.mrf.mxu0
  %1107 = vmatprep.mubr.bf16.mxu0 0
  %1108 = vmatmul.mubr.bf16.gmra.mxu0 %v1007
  %v1109 = vpop.f32.mrf.mxu0
  %v1110 = vadd.f32 %v910, %v1109
  %v1111 = vpop.f32.mrf.mxu0
  %v1112 = vpop.f32.mrf.mxu0
  %v1113 = vadd.f32 %v913, %v1112
  %v1114 = vpop.f32.mrf.mxu0
  %1115 = vmatprep.mubr.bf16.mxu0 0
  %1116 = vmatmul.mubr.bf16.gmra.mxu0 %v1010
  %v1117 = vpop.f32.mrf.mxu0
  %v1118 = vadd.f32 %v918, %v1117
  %v1119 = vpop.f32.mrf.mxu0
  %v1120 = vpop.f32.mrf.mxu0
  %v1121 = vadd.f32 %v921, %v1120
  %v1122 = vpop.f32.mrf.mxu0
  %1123 = vmatprep.mubr.bf16.mxu0 0
  %1124 = vmatmul.mubr.bf16.gmra.mxu0 %v1013
  %v1125 = vpop.f32.mrf.mxu0
  %v1126 = vadd.f32 %v926, %v1125
  %v1127 = vpop.f32.mrf.mxu0
  %v1128 = vpop.f32.mrf.mxu0
  %v1129 = vadd.f32 %v929, %v1128
  %v1130 = vpop.f32.mrf.mxu0
  %1131 = vmatprep.mubr.bf16.mxu0 0
  %1132 = vmatmul.mubr.bf16.gmra.mxu0 %v1016
  %v1133 = vpop.f32.mrf.mxu0
  %v1134 = vadd.f32 %v934, %v1133
  %v1135 = vpop.f32.mrf.mxu0
  %v1136 = vpop.f32.mrf.mxu0
  %v1137 = vadd.f32 %v937, %v1136
  %v1138 = vpop.f32.mrf.mxu0
  %1139 = vmatprep.mubr.bf16.mxu0 0
  %1140 = vmatmul.mubr.bf16.gmra.mxu0 %v1019
  %v1141 = vpop.f32.mrf.mxu0
  %v1142 = vadd.f32 %v942, %v1141
  %v1143 = vpop.f32.mrf.mxu0
  %v1144 = vpop.f32.mrf.mxu0
  %v1145 = vadd.f32 %v945, %v1144
  %v1146 = vpop.f32.mrf.mxu0
  %1147 = vmatprep.mubr.bf16.mxu0 0
  %1148 = vmatmul.mubr.bf16.gmra.mxu0 %v1022
  %v1149 = vpop.f32.mrf.mxu0
  %v1150 = vadd.f32 %v950, %v1149
  %v1151 = vpop.f32.mrf.mxu0
  %v1152 = vpop.f32.mrf.mxu0
  %v1153 = vadd.f32 %v953, %v1152
  %v1154 = vpop.f32.mrf.mxu0
  %1155 = vmatprep.mubr.bf16.mxu0 0
  %1156 = vmatmul.mubr.bf16.gmra.mxu0 %v1025
  %v1157 = vpop.f32.mrf.mxu0
  %v1158 = vadd.f32 %v958, %v1157
  %v1159 = vpop.f32.mrf.mxu0
  %v1160 = vpop.f32.mrf.mxu0
  %v1161 = vpop.f32.mrf.mxu0
  %1162 = vdwg.mxu0
  %v1163 = vld [vmem:[%s7] sm:$0x1]
  %v1165 = vlaneseq
  %v1166 = vshrl.u32 %v1165, 7
  %v1167 = vsub.s32 0, %v1166
  %v1168 = vrot.slane %v1163, %v1167
  %v1170 = vadd.f32 %v1062, %v1168
  %v1171 = vadd.f32 %v1065, %v1168
  %v1172 = vadd.f32 %v1070, %v1168
  %v1173 = vadd.f32 %v1073, %v1168
  %v1174 = vadd.f32 %v1078, %v1168
  %v1175 = vadd.f32 %v1081, %v1168
  %v1176 = vadd.f32 %v1086, %v1168
  %v1177 = vadd.f32 %v1089, %v1168
  %v1178 = vadd.f32 %v1094, %v1168
  %v1179 = vadd.f32 %v1097, %v1168
  %v1180 = vadd.f32 %v1102, %v1168
  %v1181 = vadd.f32 %v1105, %v1168
  %v1182 = vadd.f32 %v1110, %v1168
  %v1183 = vadd.f32 %v1113, %v1168
  %v1184 = vadd.f32 %v1118, %v1168
  %v1185 = vadd.f32 %v1121, %v1168
  %v1186 = vadd.f32 %v1126, %v1168
  %v1187 = vadd.f32 %v1129, %v1168
  %v1188 = vadd.f32 %v1134, %v1168
  %v1189 = vadd.f32 %v1137, %v1168
  %v1190 = vadd.f32 %v1142, %v1168
  %v1191 = vadd.f32 %v1145, %v1168
  %v1192 = vadd.f32 %v1150, %v1168
  %v1193 = vadd.f32 %v1153, %v1168
  %v1194 = vadd.f32 %v1158, %v1168
  %v1195 = vxor.u32 %v1170, 2147483648
  %v1196 = vxor.u32 %v1171, 2147483648
  %v1197 = vxor.u32 %v1172, 2147483648
  %v1198 = vxor.u32 %v1173, 2147483648
  %v1199 = vxor.u32 %v1174, 2147483648
  %v1200 = vxor.u32 %v1175, 2147483648
  %v1201 = vxor.u32 %v1176, 2147483648
  %v1202 = vxor.u32 %v1177, 2147483648
  %v1203 = vxor.u32 %v1178, 2147483648
  %v1204 = vxor.u32 %v1179, 2147483648
  %v1205 = vxor.u32 %v1180, 2147483648
  %v1206 = vxor.u32 %v1181, 2147483648
  %v1207 = vxor.u32 %v1182, 2147483648
  %v1208 = vxor.u32 %v1183, 2147483648
  %v1209 = vxor.u32 %v1184, 2147483648
  %v1210 = vxor.u32 %v1185, 2147483648
  %v1211 = vxor.u32 %v1186, 2147483648
  %v1212 = vxor.u32 %v1187, 2147483648
  %v1213 = vxor.u32 %v1188, 2147483648
  %v1214 = vxor.u32 %v1189, 2147483648
  %v1215 = vxor.u32 %v1190, 2147483648
  %v1216 = vxor.u32 %v1191, 2147483648
  %v1217 = vxor.u32 %v1192, 2147483648
  %v1218 = vxor.u32 %v1193, 2147483648
  %v1219 = vxor.u32 %v1194, 2147483648
  %v1220 = vmul.f32 %v1195, 1.442695
  %v1221 = vpow.pop %v1220
  %v1222 = vmul.f32 %v1196, 1.442695
  %v1223 = vpow.pop %v1222
  %v1224 = vmul.f32 %v1197, 1.442695
  %v1225 = vpow.pop %v1224
  %v1226 = vmul.f32 %v1198, 1.442695
  %v1227 = vpow.pop %v1226
  %v1228 = vmul.f32 %v1199, 1.442695
  %v1229 = vpow.pop %v1228
  %v1230 = vmul.f32 %v1200, 1.442695
  %v1231 = vpow.pop %v1230
  %v1232 = vmul.f32 %v1201, 1.442695
  %v1233 = vpow.pop %v1232
  %v1234 = vmul.f32 %v1202, 1.442695
  %v1235 = vpow.pop %v1234
  %v1236 = vmul.f32 %v1203, 1.442695
  %v1237 = vpow.pop %v1236
  %v1238 = vmul.f32 %v1204, 1.442695
  %v1239 = vpow.pop %v1238
  %v1240 = vmul.f32 %v1205, 1.442695
  %v1241 = vpow.pop %v1240
  %v1242 = vmul.f32 %v1206, 1.442695
  %v1243 = vpow.pop %v1242
  %v1244 = vmul.f32 %v1207, 1.442695
  %v1245 = vpow.pop %v1244
  %v1246 = vmul.f32 %v1208, 1.442695
  %v1247 = vpow.pop %v1246
  %v1248 = vmul.f32 %v1209, 1.442695
  %v1249 = vpow.pop %v1248
  %v1250 = vmul.f32 %v1210, 1.442695
  %v1251 = vpow.pop %v1250
  %v1252 = vmul.f32 %v1211, 1.442695
  %v1253 = vpow.pop %v1252
  %v1254 = vmul.f32 %v1212, 1.442695
  %v1255 = vpow.pop %v1254
  %v1256 = vmul.f32 %v1213, 1.442695
  %v1257 = vpow.pop %v1256
  %v1258 = vmul.f32 %v1214, 1.442695
  %v1259 = vpow.pop %v1258
  %v1260 = vmul.f32 %v1215, 1.442695
  %v1261 = vpow.pop %v1260
  %v1262 = vmul.f32 %v1216, 1.442695
  %v1263 = vpow.pop %v1262
  %v1264 = vmul.f32 %v1217, 1.442695
  %v1265 = vpow.pop %v1264
  %v1266 = vmul.f32 %v1218, 1.442695
  %v1267 = vpow.pop %v1266
  %v1268 = vmul.f32 %v1219, 1.442695
  %v1269 = vpow.pop %v1268
  %v1270 = vadd.f32 %v1221, 1.0
  %v1271 = vadd.f32 %v1223, 1.0
  %v1272 = vadd.f32 %v1225, 1.0
  %v1273 = vadd.f32 %v1227, 1.0
  %v1274 = vadd.f32 %v1229, 1.0
  %v1275 = vadd.f32 %v1231, 1.0
  %v1276 = vadd.f32 %v1233, 1.0
  %v1277 = vadd.f32 %v1235, 1.0
  %v1278 = vadd.f32 %v1237, 1.0
  %v1279 = vadd.f32 %v1239, 1.0
  %v1280 = vadd.f32 %v1241, 1.0
  %v1281 = vadd.f32 %v1243, 1.0
  %v1282 = vadd.f32 %v1245, 1.0
  %v1283 = vadd.f32 %v1247, 1.0
  %v1284 = vadd.f32 %v1249, 1.0
  %v1285 = vadd.f32 %v1251, 1.0
  %v1286 = vadd.f32 %v1253, 1.0
  %v1287 = vadd.f32 %v1255, 1.0
  %v1288 = vadd.f32 %v1257, 1.0
  %v1289 = vadd.f32 %v1259, 1.0
  %v1290 = vadd.f32 %v1261, 1.0
  %v1291 = vadd.f32 %v1263, 1.0
  %v1292 = vadd.f32 %v1265, 1.0
  %v1293 = vadd.f32 %v1267, 1.0
  %v1294 = vadd.f32 %v1269, 1.0
  %v1295 = vrcp.pop %v1270
  %v1296 = vmul.f32 1.0, %v1295
  %v1297 = vrcp.pop %v1271
  %v1298 = vmul.f32 1.0, %v1297
  %v1299 = vrcp.pop %v1272
  %v1300 = vmul.f32 1.0, %v1299
  %v1301 = vrcp.pop %v1273
  %v1302 = vmul.f32 1.0, %v1301
  %v1303 = vrcp.pop %v1274
  %v1304 = vmul.f32 1.0, %v1303
  %v1305 = vrcp.pop %v1275
  %v1306 = vmul.f32 1.0, %v1305
  %v1307 = vrcp.pop %v1276
  %v1308 = vmul.f32 1.0, %v1307
  %v1309 = vrcp.pop %v1277
  %v1310 = vmul.f32 1.0, %v1309
  %v1311 = vrcp.pop %v1278
  %v1312 = vmul.f32 1.0, %v1311
  %v1313 = vrcp.pop %v1279
  %v1314 = vmul.f32 1.0, %v1313
  %v1315 = vrcp.pop %v1280
  %v1316 = vmul.f32 1.0, %v1315
  %v1317 = vrcp.pop %v1281
  %v1318 = vmul.f32 1.0, %v1317
  %v1319 = vrcp.pop %v1282
  %v1320 = vmul.f32 1.0, %v1319
  %v1321 = vrcp.pop %v1283
  %v1322 = vmul.f32 1.0, %v1321
  %v1323 = vrcp.pop %v1284
  %v1324 = vmul.f32 1.0, %v1323
  %v1325 = vrcp.pop %v1285
  %v1326 = vmul.f32 1.0, %v1325
  %v1327 = vrcp.pop %v1286
  %v1328 = vmul.f32 1.0, %v1327
  %v1329 = vrcp.pop %v1287
  %v1330 = vmul.f32 1.0, %v1329
  %v1331 = vrcp.pop %v1288
  %v1332 = vmul.f32 1.0, %v1331
  %v1333 = vrcp.pop %v1289
  %v1334 = vmul.f32 1.0, %v1333
  %v1335 = vrcp.pop %v1290
  %v1336 = vmul.f32 1.0, %v1335
  %v1337 = vrcp.pop %v1291
  %v1338 = vmul.f32 1.0, %v1337
  %v1339 = vrcp.pop %v1292
  %v1340 = vmul.f32 1.0, %v1339
  %v1341 = vrcp.pop %v1293
  %v1342 = vmul.f32 1.0, %v1341
  %v1343 = vrcp.pop %v1294
  %v1344 = vmul.f32 1.0, %v1343
  %v1345 = vmul.f32 %v1170, %v1296
  %v1346 = vmul.f32 %v1171, %v1298
  %v1347 = vmul.f32 %v1172, %v1300
  %v1348 = vmul.f32 %v1173, %v1302
  %v1349 = vmul.f32 %v1174, %v1304
  %v1350 = vmul.f32 %v1175, %v1306
  %v1351 = vmul.f32 %v1176, %v1308
  %v1352 = vmul.f32 %v1177, %v1310
  %v1353 = vmul.f32 %v1178, %v1312
  %v1354 = vmul.f32 %v1179, %v1314
  %v1355 = vmul.f32 %v1180, %v1316
  %v1356 = vmul.f32 %v1181, %v1318
  %v1357 = vmul.f32 %v1182, %v1320
  %v1358 = vmul.f32 %v1183, %v1322
  %v1359 = vmul.f32 %v1184, %v1324
  %v1360 = vmul.f32 %v1185, %v1326
  %v1361 = vmul.f32 %v1186, %v1328
  %v1362 = vmul.f32 %v1187, %v1330
  %v1363 = vmul.f32 %v1188, %v1332
  %v1364 = vmul.f32 %v1189, %v1334
  %v1365 = vmul.f32 %v1190, %v1336
  %v1366 = vmul.f32 %v1191, %v1338
  %v1367 = vmul.f32 %v1192, %v1340
  %v1368 = vmul.f32 %v1193, %v1342
  %v1369 = vmul.f32 %v1194, %v1344
  %v1370 = vpack.c.bf16 %v1346, %v1345
  %v1371 = vpack.c.bf16 %v1348, %v1347
  %v1372 = vpack.c.bf16 %v1350, %v1349
  %v1373 = vpack.c.bf16 %v1352, %v1351
  %v1374 = vpack.c.bf16 %v1354, %v1353
  %v1375 = vpack.c.bf16 %v1356, %v1355
  %v1376 = vpack.c.bf16 %v1358, %v1357
  %v1377 = vpack.c.bf16 %v1360, %v1359
  %v1378 = vpack.c.bf16 %v1362, %v1361
  %v1379 = vpack.c.bf16 %v1364, %v1363
  %v1380 = vpack.c.bf16 %v1366, %v1365
  %v1381 = vpack.c.bf16 %v1368, %v1367
  %v1382 = vpack.c.bf16 %v1369, %v1369
  %v1383 = vld [vmem:[%s8] sm:$0xf]
  %v1384 = vld [vmem:[%s8 + $0x4] sm:$0xf]
  %v1385 = vld [vmem:[%s8 + $0x8] sm:$0xf]
  %v1386 = vld [vmem:[%s8 + $0xc] sm:$0xf]
  %v1387 = vld [vmem:[%s8 + $0x10] sm:$0xf]
  %v1388 = vld [vmem:[%s8 + $0x14] sm:$0xf]
  %v1389 = vld [vmem:[%s8 + $0x18] sm:$0xf]
  %v1390 = vld [vmem:[%s8 + $0x1c] sm:$0xf]
  %v1391 = vld [vmem:[%s9] sm:$0xf]
  %v1392 = vld [vmem:[%s9 + $0x4] sm:$0xf]
  %v1395 = vunpack.c.l.b16 %v1391
  %v1396 = vunpack.c.l.b16 %v1392
  %v1397 = vpack.c.b16 %v1396, %v1395
  %1399 = vmatprep.subr.bf16.mxu0 0
  %1400 = vmatpush1.bf16.msra.mxu0 0
  %1401 = vmatprep.subr.bf16.mxu0 0
  %1402 = vmatpush1.bf16.msra.mxu0 0
  %1403 = vmatprep.subr.bf16.mxu0 0
  %1404 = vmatpush1.bf16.msra.mxu0 0
  %1405 = vmatprep.subr.bf16.mxu0 0
  %1406 = vmatpush1.bf16.msra.mxu0 0
  %1407 = vmatprep.subr.bf16.mxu0 0
  %1408 = vmatpush1.bf16.msra.mxu0 0
  %1409 = vmatprep.subr.bf16.mxu0 0
  %1410 = vmatpush1.bf16.msra.mxu0 0
  %1411 = vmatprep.subr.bf16.mxu0 0
  %1412 = vmatpush1.bf16.msra.mxu0 0
  %1413 = vmatprep.subr.bf16.mxu0 0
  %1414 = vmatpush1.bf16.msra.mxu0 %v1397
  %1415 = vmatprep.subr.bf16.mxu0 0
  %1416 = vmatpush2.bf16.msra.mxu0 0
  %1417 = vmatprep.subr.bf16.mxu0 0
  %1418 = vmatpush2.bf16.msra.mxu0 0
  %1419 = vmatprep.subr.bf16.mxu0 0
  %1420 = vmatpush2.bf16.msra.mxu0 0
  %1421 = vmatprep.subr.bf16.mxu0 0
  %1422 = vmatpush2.bf16.msra.mxu0 0
  %1423 = vmatprep.subr.bf16.mxu0 0
  %1424 = vmatpush2.bf16.msra.mxu0 0
  %1425 = vmatprep.subr.bf16.mxu0 0
  %1426 = vmatpush2.bf16.msra.mxu0 0
  %1427 = vmatprep.subr.bf16.mxu0 0
  %1428 = vmatpush2.bf16.msra.mxu0 0
  %1429 = vmatprep.subr.bf16.mxu0 0
  %1430 = vmatpush2.bf16.msra.mxu0 0
  %1431 = vmatprep.mubr.bf16.mxu0 0
  %1432 = vmatmul.mubr.bf16.gmra.mxu0 %v166
  %v1433 = vpop.f32.mrf.mxu0
  %v1434 = vadd.f32 0.0, %v1433
  %v1435 = vpop.f32.mrf.mxu0
  %v1436 = vpop.f32.mrf.mxu0
  %v1437 = vadd.f32 0.0, %v1436
  %v1438 = vpop.f32.mrf.mxu0
  %1439 = vmatprep.mubr.bf16.mxu0 0
  %1440 = vmatmul.mubr.bf16.gmra.mxu0 %v169
  %v1441 = vpop.f32.mrf.mxu0
  %v1442 = vadd.f32 0.0, %v1441
  %v1443 = vpop.f32.mrf.mxu0
  %v1444 = vpop.f32.mrf.mxu0
  %v1445 = vadd.f32 0.0, %v1444
  %v1446 = vpop.f32.mrf.mxu0
  %1447 = vmatprep.mubr.bf16.mxu0 0
  %1448 = vmatmul.mubr.bf16.gmra.mxu0 %v172
  %v1449 = vpop.f32.mrf.mxu0
  %v1450 = vadd.f32 0.0, %v1449
  %v1451 = vpop.f32.mrf.mxu0
  %v1452 = vpop.f32.mrf.mxu0
  %v1453 = vadd.f32 0.0, %v1452
  %v1454 = vpop.f32.mrf.mxu0
  %1455 = vmatprep.mubr.bf16.mxu0 0
  %1456 = vmatmul.mubr.bf16.gmra.mxu0 %v175
  %v1457 = vpop.f32.mrf.mxu0
  %v1458 = vadd.f32 0.0, %v1457
  %v1459 = vpop.f32.mrf.mxu0
  %v1460 = vpop.f32.mrf.mxu0
  %v1461 = vadd.f32 0.0, %v1460
  %v1462 = vpop.f32.mrf.mxu0
  %1463 = vmatprep.mubr.bf16.mxu0 0
  %1464 = vmatmul.mubr.bf16.gmra.mxu0 %v178
  %v1465 = vpop.f32.mrf.mxu0
  %v1466 = vadd.f32 0.0, %v1465
  %v1467 = vpop.f32.mrf.mxu0
  %v1468 = vpop.f32.mrf.mxu0
  %v1469 = vadd.f32 0.0, %v1468
  %v1470 = vpop.f32.mrf.mxu0
  %1471 = vmatprep.mubr.bf16.mxu0 0
  %1472 = vmatmul.mubr.bf16.gmra.mxu0 %v181
  %v1473 = vpop.f32.mrf.mxu0
  %v1474 = vadd.f32 0.0, %v1473
  %v1475 = vpop.f32.mrf.mxu0
  %v1476 = vpop.f32.mrf.mxu0
  %v1477 = vadd.f32 0.0, %v1476
  %v1478 = vpop.f32.mrf.mxu0
  %1479 = vmatprep.mubr.bf16.mxu0 0
  %1480 = vmatmul.mubr.bf16.gmra.mxu0 %v184
  %v1481 = vpop.f32.mrf.mxu0
  %v1482 = vadd.f32 0.0, %v1481
  %v1483 = vpop.f32.mrf.mxu0
  %v1484 = vpop.f32.mrf.mxu0
  %v1485 = vadd.f32 0.0, %v1484
  %v1486 = vpop.f32.mrf.mxu0
  %1487 = vmatprep.mubr.bf16.mxu0 0
  %1488 = vmatmul.mubr.bf16.gmra.mxu0 %v187
  %v1489 = vpop.f32.mrf.mxu0
  %v1490 = vadd.f32 0.0, %v1489
  %v1491 = vpop.f32.mrf.mxu0
  %v1492 = vpop.f32.mrf.mxu0
  %v1493 = vadd.f32 0.0, %v1492
  %v1494 = vpop.f32.mrf.mxu0
  %1495 = vmatprep.mubr.bf16.mxu0 0
  %1496 = vmatmul.mubr.bf16.gmra.mxu0 %v190
  %v1497 = vpop.f32.mrf.mxu0
  %v1498 = vadd.f32 0.0, %v1497
  %v1499 = vpop.f32.mrf.mxu0
  %v1500 = vpop.f32.mrf.mxu0
  %v1501 = vadd.f32 0.0, %v1500
  %v1502 = vpop.f32.mrf.mxu0
  %1503 = vmatprep.mubr.bf16.mxu0 0
  %1504 = vmatmul.mubr.bf16.gmra.mxu0 %v193
  %v1505 = vpop.f32.mrf.mxu0
  %v1506 = vadd.f32 0.0, %v1505
  %v1507 = vpop.f32.mrf.mxu0
  %v1508 = vpop.f32.mrf.mxu0
  %v1509 = vadd.f32 0.0, %v1508
  %v1510 = vpop.f32.mrf.mxu0
  %1511 = vmatprep.mubr.bf16.mxu0 0
  %1512 = vmatmul.mubr.bf16.gmra.mxu0 %v196
  %v1513 = vpop.f32.mrf.mxu0
  %v1514 = vadd.f32 0.0, %v1513
  %v1515 = vpop.f32.mrf.mxu0
  %v1516 = vpop.f32.mrf.mxu0
  %v1517 = vadd.f32 0.0, %v1516
  %v1518 = vpop.f32.mrf.mxu0
  %1519 = vmatprep.mubr.bf16.mxu0 0
  %1520 = vmatmul.mubr.bf16.gmra.mxu0 %v199
  %v1521 = vpop.f32.mrf.mxu0
  %v1522 = vadd.f32 0.0, %v1521
  %v1523 = vpop.f32.mrf.mxu0
  %v1524 = vpop.f32.mrf.mxu0
  %v1525 = vadd.f32 0.0, %v1524
  %v1526 = vpop.f32.mrf.mxu0
  %1527 = vmatprep.mubr.bf16.mxu0 0
  %1528 = vmatmul.mubr.bf16.gmra.mxu0 %v202
  %v1529 = vpop.f32.mrf.mxu0
  %v1530 = vadd.f32 0.0, %v1529
  %v1531 = vpop.f32.mrf.mxu0
  %v1532 = vpop.f32.mrf.mxu0
  %v1533 = vpop.f32.mrf.mxu0
  %1534 = vdwg.mxu0
  %v1543 = vunpack.c.l.b16 %v1383
  %v1544 = vunpack.c.l.b16 %v1384
  %v1545 = vunpack.c.l.b16 %v1385
  %v1546 = vunpack.c.l.b16 %v1386
  %v1547 = vunpack.c.l.b16 %v1387
  %v1548 = vunpack.c.l.b16 %v1388
  %v1549 = vunpack.c.l.b16 %v1389
  %v1550 = vunpack.c.l.b16 %v1390
  %v1551 = vpack.c.b16 %v1544, %v1543
  %v1552 = vpack.c.b16 %v1546, %v1545
  %v1553 = vpack.c.b16 %v1548, %v1547
  %v1554 = vpack.c.b16 %v1550, %v1549
  %v1560 = vsel %vm987, %v1370, 0
  %v1563 = vsel %vm987, %v1371, 0
  %v1566 = vsel %vm987, %v1372, 0
  %v1569 = vsel %vm987, %v1373, 0
  %v1572 = vsel %vm987, %v1374, 0
  %v1575 = vsel %vm987, %v1375, 0
  %v1578 = vsel %vm987, %v1376, 0
  %v1581 = vsel %vm987, %v1377, 0
  %v1584 = vsel %vm987, %v1378, 0
  %v1587 = vsel %vm987, %v1379, 0
  %v1590 = vsel %vm987, %v1380, 0
  %v1593 = vsel %vm987, %v1381, 0
  %v1596 = vsel %vm987, %v1382, 0
  %1598 = vmatprep.subr.bf16.mxu0 0
  %1599 = vmatpush1.bf16.msra.mxu0 0
  %1600 = vmatprep.subr.bf16.mxu0 0
  %1601 = vmatpush1.bf16.msra.mxu0 0
  %1602 = vmatprep.subr.bf16.mxu0 0
  %1603 = vmatpush1.bf16.msra.mxu0 0
  %1604 = vmatprep.subr.bf16.mxu0 0
  %1605 = vmatpush1.bf16.msra.mxu0 0
  %1606 = vmatprep.subr.bf16.mxu0 0
  %1607 = vmatpush1.bf16.msra.mxu0 %v1554
  %1608 = vmatprep.subr.bf16.mxu0 0
  %1609 = vmatpush1.bf16.msra.mxu0 %v1553
  %1610 = vmatprep.subr.bf16.mxu0 0
  %1611 = vmatpush1.bf16.msra.mxu0 %v1552
  %1612 = vmatprep.subr.bf16.mxu0 0
  %1613 = vmatpush1.bf16.msra.mxu0 %v1551
  %1614 = vmatprep.subr.bf16.mxu0 0
  %1615 = vmatpush2.bf16.msra.mxu0 0
  %1616 = vmatprep.subr.bf16.mxu0 0
  %1617 = vmatpush2.bf16.msra.mxu0 0
  %1618 = vmatprep.subr.bf16.mxu0 0
  %1619 = vmatpush2.bf16.msra.mxu0 0
  %1620 = vmatprep.subr.bf16.mxu0 0
  %1621 = vmatpush2.bf16.msra.mxu0 0
  %1622 = vmatprep.subr.bf16.mxu0 0
  %1623 = vmatpush2.bf16.msra.mxu0 0
  %1624 = vmatprep.subr.bf16.mxu0 0
  %1625 = vmatpush2.bf16.msra.mxu0 0
  %1626 = vmatprep.subr.bf16.mxu0 0
  %1627 = vmatpush2.bf16.msra.mxu0 0
  %1628 = vmatprep.subr.bf16.mxu0 0
  %1629 = vmatpush2.bf16.msra.mxu0 0
  %1630 = vmatprep.mubr.bf16.mxu0 0
  %1631 = vmatmul.mubr.bf16.gmra.mxu0 %v1560
  %v1632 = vpop.f32.mrf.mxu0
  %v1633 = vadd.f32 %v1434, %v1632
  %v1634 = vpop.f32.mrf.mxu0
  %v1635 = vpop.f32.mrf.mxu0
  %v1636 = vadd.f32 %v1437, %v1635
  %v1637 = vpop.f32.mrf.mxu0
  %1638 = vmatprep.mubr.bf16.mxu0 0
  %1639 = vmatmul.mubr.bf16.gmra.mxu0 %v1563
  %v1640 = vpop.f32.mrf.mxu0
  %v1641 = vadd.f32 %v1442, %v1640
  %v1642 = vpop.f32.mrf.mxu0
  %v1643 = vpop.f32.mrf.mxu0
  %v1644 = vadd.f32 %v1445, %v1643
  %v1645 = vpop.f32.mrf.mxu0
  %1646 = vmatprep.mubr.bf16.mxu0 0
  %1647 = vmatmul.mubr.bf16.gmra.mxu0 %v1566
  %v1648 = vpop.f32.mrf.mxu0
  %v1649 = vadd.f32 %v1450, %v1648
  %v1650 = vpop.f32.mrf.mxu0
  %v1651 = vpop.f32.mrf.mxu0
  %v1652 = vadd.f32 %v1453, %v1651
  %v1653 = vpop.f32.mrf.mxu0
  %1654 = vmatprep.mubr.bf16.mxu0 0
  %1655 = vmatmul.mubr.bf16.gmra.mxu0 %v1569
  %v1656 = vpop.f32.mrf.mxu0
  %v1657 = vadd.f32 %v1458, %v1656
  %v1658 = vpop.f32.mrf.mxu0
  %v1659 = vpop.f32.mrf.mxu0
  %v1660 = vadd.f32 %v1461, %v1659
  %v1661 = vpop.f32.mrf.mxu0
  %1662 = vmatprep.mubr.bf16.mxu0 0
  %1663 = vmatmul.mubr.bf16.gmra.mxu0 %v1572
  %v1664 = vpop.f32.mrf.mxu0
  %v1665 = vadd.f32 %v1466, %v1664
  %v1666 = vpop.f32.mrf.mxu0
  %v1667 = vpop.f32.mrf.mxu0
  %v1668 = vadd.f32 %v1469, %v1667
  %v1669 = vpop.f32.mrf.mxu0
  %1670 = vmatprep.mubr.bf16.mxu0 0
  %1671 = vmatmul.mubr.bf16.gmra.mxu0 %v1575
  %v1672 = vpop.f32.mrf.mxu0
  %v1673 = vadd.f32 %v1474, %v1672
  %v1674 = vpop.f32.mrf.mxu0
  %v1675 = vpop.f32.mrf.mxu0
  %v1676 = vadd.f32 %v1477, %v1675
  %v1677 = vpop.f32.mrf.mxu0
  %1678 = vmatprep.mubr.bf16.mxu0 0
  %1679 = vmatmul.mubr.bf16.gmra.mxu0 %v1578
  %v1680 = vpop.f32.mrf.mxu0
  %v1681 = vadd.f32 %v1482, %v1680
  %v1682 = vpop.f32.mrf.mxu0
  %v1683 = vpop.f32.mrf.mxu0
  %v1684 = vadd.f32 %v1485, %v1683
  %v1685 = vpop.f32.mrf.mxu0
  %1686 = vmatprep.mubr.bf16.mxu0 0
  %1687 = vmatmul.mubr.bf16.gmra.mxu0 %v1581
  %v1688 = vpop.f32.mrf.mxu0
  %v1689 = vadd.f32 %v1490, %v1688
  %v1690 = vpop.f32.mrf.mxu0
  %v1691 = vpop.f32.mrf.mxu0
  %v1692 = vadd.f32 %v1493, %v1691
  %v1693 = vpop.f32.mrf.mxu0
  %1694 = vmatprep.mubr.bf16.mxu0 0
  %1695 = vmatmul.mubr.bf16.gmra.mxu0 %v1584
  %v1696 = vpop.f32.mrf.mxu0
  %v1697 = vadd.f32 %v1498, %v1696
  %v1698 = vpop.f32.mrf.mxu0
  %v1699 = vpop.f32.mrf.mxu0
  %v1700 = vadd.f32 %v1501, %v1699
  %v1701 = vpop.f32.mrf.mxu0
  %1702 = vmatprep.mubr.bf16.mxu0 0
  %1703 = vmatmul.mubr.bf16.gmra.mxu0 %v1587
  %v1704 = vpop.f32.mrf.mxu0
  %v1705 = vadd.f32 %v1506, %v1704
  %v1706 = vpop.f32.mrf.mxu0
  %v1707 = vpop.f32.mrf.mxu0
  %v1708 = vadd.f32 %v1509, %v1707
  %v1709 = vpop.f32.mrf.mxu0
  %1710 = vmatprep.mubr.bf16.mxu0 0
  %1711 = vmatmul.mubr.bf16.gmra.mxu0 %v1590
  %v1712 = vpop.f32.mrf.mxu0
  %v1713 = vadd.f32 %v1514, %v1712
  %v1714 = vpop.f32.mrf.mxu0
  %v1715 = vpop.f32.mrf.mxu0
  %v1716 = vadd.f32 %v1517, %v1715
  %v1717 = vpop.f32.mrf.mxu0
  %1718 = vmatprep.mubr.bf16.mxu0 0
  %1719 = vmatmul.mubr.bf16.gmra.mxu0 %v1593
  %v1720 = vpop.f32.mrf.mxu0
  %v1721 = vadd.f32 %v1522, %v1720
  %v1722 = vpop.f32.mrf.mxu0
  %v1723 = vpop.f32.mrf.mxu0
  %v1724 = vadd.f32 %v1525, %v1723
  %v1725 = vpop.f32.mrf.mxu0
  %1726 = vmatprep.mubr.bf16.mxu0 0
  %1727 = vmatmul.mubr.bf16.gmra.mxu0 %v1596
  %v1728 = vpop.f32.mrf.mxu0
  %v1729 = vadd.f32 %v1530, %v1728
  %v1730 = vpop.f32.mrf.mxu0
  %v1731 = vpop.f32.mrf.mxu0
  %v1732 = vpop.f32.mrf.mxu0
  %1733 = vdwg.mxu0
  %v1734 = vld [vmem:[%s10] sm:$0x1]
  %v1736 = vlaneseq
  %v1737 = vshrl.u32 %v1736, 7
  %v1738 = vsub.s32 0, %v1737
  %v1739 = vrot.slane %v1734, %v1738
  %v1741 = vadd.f32 %v1633, %v1739
  %v1742 = vadd.f32 %v1636, %v1739
  %v1743 = vadd.f32 %v1641, %v1739
  %v1744 = vadd.f32 %v1644, %v1739
  %v1745 = vadd.f32 %v1649, %v1739
  %v1746 = vadd.f32 %v1652, %v1739
  %v1747 = vadd.f32 %v1657, %v1739
  %v1748 = vadd.f32 %v1660, %v1739
  %v1749 = vadd.f32 %v1665, %v1739
  %v1750 = vadd.f32 %v1668, %v1739
  %v1751 = vadd.f32 %v1673, %v1739
  %v1752 = vadd.f32 %v1676, %v1739
  %v1753 = vadd.f32 %v1681, %v1739
  %v1754 = vadd.f32 %v1684, %v1739
  %v1755 = vadd.f32 %v1689, %v1739
  %v1756 = vadd.f32 %v1692, %v1739
  %v1757 = vadd.f32 %v1697, %v1739
  %v1758 = vadd.f32 %v1700, %v1739
  %v1759 = vadd.f32 %v1705, %v1739
  %v1760 = vadd.f32 %v1708, %v1739
  %v1761 = vadd.f32 %v1713, %v1739
  %v1762 = vadd.f32 %v1716, %v1739
  %v1763 = vadd.f32 %v1721, %v1739
  %v1764 = vadd.f32 %v1724, %v1739
  %v1765 = vadd.f32 %v1729, %v1739
  %v1766 = vxor.u32 %v1741, 2147483648
  %v1767 = vxor.u32 %v1742, 2147483648
  %v1768 = vxor.u32 %v1743, 2147483648
  %v1769 = vxor.u32 %v1744, 2147483648
  %v1770 = vxor.u32 %v1745, 2147483648
  %v1771 = vxor.u32 %v1746, 2147483648
  %v1772 = vxor.u32 %v1747, 2147483648
  %v1773 = vxor.u32 %v1748, 2147483648
  %v1774 = vxor.u32 %v1749, 2147483648
  %v1775 = vxor.u32 %v1750, 2147483648
  %v1776 = vxor.u32 %v1751, 2147483648
  %v1777 = vxor.u32 %v1752, 2147483648
  %v1778 = vxor.u32 %v1753, 2147483648
  %v1779 = vxor.u32 %v1754, 2147483648
  %v1780 = vxor.u32 %v1755, 2147483648
  %v1781 = vxor.u32 %v1756, 2147483648
  %v1782 = vxor.u32 %v1757, 2147483648
  %v1783 = vxor.u32 %v1758, 2147483648
  %v1784 = vxor.u32 %v1759, 2147483648
  %v1785 = vxor.u32 %v1760, 2147483648
  %v1786 = vxor.u32 %v1761, 2147483648
  %v1787 = vxor.u32 %v1762, 2147483648
  %v1788 = vxor.u32 %v1763, 2147483648
  %v1789 = vxor.u32 %v1764, 2147483648
  %v1790 = vxor.u32 %v1765, 2147483648
  %v1791 = vmul.f32 %v1766, 1.442695
  %v1792 = vpow.pop %v1791
  %v1793 = vmul.f32 %v1767, 1.442695
  %v1794 = vpow.pop %v1793
  %v1795 = vmul.f32 %v1768, 1.442695
  %v1796 = vpow.pop %v1795
  %v1797 = vmul.f32 %v1769, 1.442695
  %v1798 = vpow.pop %v1797
  %v1799 = vmul.f32 %v1770, 1.442695
  %v1800 = vpow.pop %v1799
  %v1801 = vmul.f32 %v1771, 1.442695
  %v1802 = vpow.pop %v1801
  %v1803 = vmul.f32 %v1772, 1.442695
  %v1804 = vpow.pop %v1803
  %v1805 = vmul.f32 %v1773, 1.442695
  %v1806 = vpow.pop %v1805
  %v1807 = vmul.f32 %v1774, 1.442695
  %v1808 = vpow.pop %v1807
  %v1809 = vmul.f32 %v1775, 1.442695
  %v1810 = vpow.pop %v1809
  %v1811 = vmul.f32 %v1776, 1.442695
  %v1812 = vpow.pop %v1811
  %v1813 = vmul.f32 %v1777, 1.442695
  %v1814 = vpow.pop %v1813
  %v1815 = vmul.f32 %v1778, 1.442695
  %v1816 = vpow.pop %v1815
  %v1817 = vmul.f32 %v1779, 1.442695
  %v1818 = vpow.pop %v1817
  %v1819 = vmul.f32 %v1780, 1.442695
  %v1820 = vpow.pop %v1819
  %v1821 = vmul.f32 %v1781, 1.442695
  %v1822 = vpow.pop %v1821
  %v1823 = vmul.f32 %v1782, 1.442695
  %v1824 = vpow.pop %v1823
  %v1825 = vmul.f32 %v1783, 1.442695
  %v1826 = vpow.pop %v1825
  %v1827 = vmul.f32 %v1784, 1.442695
  %v1828 = vpow.pop %v1827
  %v1829 = vmul.f32 %v1785, 1.442695
  %v1830 = vpow.pop %v1829
  %v1831 = vmul.f32 %v1786, 1.442695
  %v1832 = vpow.pop %v1831
  %v1833 = vmul.f32 %v1787, 1.442695
  %v1834 = vpow.pop %v1833
  %v1835 = vmul.f32 %v1788, 1.442695
  %v1836 = vpow.pop %v1835
  %v1837 = vmul.f32 %v1789, 1.442695
  %v1838 = vpow.pop %v1837
  %v1839 = vmul.f32 %v1790, 1.442695
  %v1840 = vpow.pop %v1839
  %v1841 = vadd.f32 %v1792, 1.0
  %v1842 = vadd.f32 %v1794, 1.0
  %v1843 = vadd.f32 %v1796, 1.0
  %v1844 = vadd.f32 %v1798, 1.0
  %v1845 = vadd.f32 %v1800, 1.0
  %v1846 = vadd.f32 %v1802, 1.0
  %v1847 = vadd.f32 %v1804, 1.0
  %v1848 = vadd.f32 %v1806, 1.0
  %v1849 = vadd.f32 %v1808, 1.0
  %v1850 = vadd.f32 %v1810, 1.0
  %v1851 = vadd.f32 %v1812, 1.0
  %v1852 = vadd.f32 %v1814, 1.0
  %v1853 = vadd.f32 %v1816, 1.0
  %v1854 = vadd.f32 %v1818, 1.0
  %v1855 = vadd.f32 %v1820, 1.0
  %v1856 = vadd.f32 %v1822, 1.0
  %v1857 = vadd.f32 %v1824, 1.0
  %v1858 = vadd.f32 %v1826, 1.0
  %v1859 = vadd.f32 %v1828, 1.0
  %v1860 = vadd.f32 %v1830, 1.0
  %v1861 = vadd.f32 %v1832, 1.0
  %v1862 = vadd.f32 %v1834, 1.0
  %v1863 = vadd.f32 %v1836, 1.0
  %v1864 = vadd.f32 %v1838, 1.0
  %v1865 = vadd.f32 %v1840, 1.0
  %v1866 = vrcp.pop %v1841
  %v1867 = vmul.f32 1.0, %v1866
  %v1868 = vrcp.pop %v1842
  %v1869 = vmul.f32 1.0, %v1868
  %v1870 = vrcp.pop %v1843
  %v1871 = vmul.f32 1.0, %v1870
  %v1872 = vrcp.pop %v1844
  %v1873 = vmul.f32 1.0, %v1872
  %v1874 = vrcp.pop %v1845
  %v1875 = vmul.f32 1.0, %v1874
  %v1876 = vrcp.pop %v1846
  %v1877 = vmul.f32 1.0, %v1876
  %v1878 = vrcp.pop %v1847
  %v1879 = vmul.f32 1.0, %v1878
  %v1880 = vrcp.pop %v1848
  %v1881 = vmul.f32 1.0, %v1880
  %v1882 = vrcp.pop %v1849
  %v1883 = vmul.f32 1.0, %v1882
  %v1884 = vrcp.pop %v1850
  %v1885 = vmul.f32 1.0, %v1884
  %v1886 = vrcp.pop %v1851
  %v1887 = vmul.f32 1.0, %v1886
  %v1888 = vrcp.pop %v1852
  %v1889 = vmul.f32 1.0, %v1888
  %v1890 = vrcp.pop %v1853
  %v1891 = vmul.f32 1.0, %v1890
  %v1892 = vrcp.pop %v1854
  %v1893 = vmul.f32 1.0, %v1892
  %v1894 = vrcp.pop %v1855
  %v1895 = vmul.f32 1.0, %v1894
  %v1896 = vrcp.pop %v1856
  %v1897 = vmul.f32 1.0, %v1896
  %v1898 = vrcp.pop %v1857
  %v1899 = vmul.f32 1.0, %v1898
  %v1900 = vrcp.pop %v1858
  %v1901 = vmul.f32 1.0, %v1900
  %v1902 = vrcp.pop %v1859
  %v1903 = vmul.f32 1.0, %v1902
  %v1904 = vrcp.pop %v1860
  %v1905 = vmul.f32 1.0, %v1904
  %v1906 = vrcp.pop %v1861
  %v1907 = vmul.f32 1.0, %v1906
  %v1908 = vrcp.pop %v1862
  %v1909 = vmul.f32 1.0, %v1908
  %v1910 = vrcp.pop %v1863
  %v1911 = vmul.f32 1.0, %v1910
  %v1912 = vrcp.pop %v1864
  %v1913 = vmul.f32 1.0, %v1912
  %v1914 = vrcp.pop %v1865
  %v1915 = vmul.f32 1.0, %v1914
  %v1916 = vmul.f32 %v1741, %v1867
  %v1917 = vmul.f32 %v1742, %v1869
  %v1918 = vmul.f32 %v1743, %v1871
  %v1919 = vmul.f32 %v1744, %v1873
  %v1920 = vmul.f32 %v1745, %v1875
  %v1921 = vmul.f32 %v1746, %v1877
  %v1922 = vmul.f32 %v1747, %v1879
  %v1923 = vmul.f32 %v1748, %v1881
  %v1924 = vmul.f32 %v1749, %v1883
  %v1925 = vmul.f32 %v1750, %v1885
  %v1926 = vmul.f32 %v1751, %v1887
  %v1927 = vmul.f32 %v1752, %v1889
  %v1928 = vmul.f32 %v1753, %v1891
  %v1929 = vmul.f32 %v1754, %v1893
  %v1930 = vmul.f32 %v1755, %v1895
  %v1931 = vmul.f32 %v1756, %v1897
  %v1932 = vmul.f32 %v1757, %v1899
  %v1933 = vmul.f32 %v1758, %v1901
  %v1934 = vmul.f32 %v1759, %v1903
  %v1935 = vmul.f32 %v1760, %v1905
  %v1936 = vmul.f32 %v1761, %v1907
  %v1937 = vmul.f32 %v1762, %v1909
  %v1938 = vmul.f32 %v1763, %v1911
  %v1939 = vmul.f32 %v1764, %v1913
  %v1940 = vmul.f32 %v1765, %v1915
  %v1941 = vunpack.c.l.bf16 %v39
  %v1942 = vunpack.c.l.bf16 %v40
  %v1943 = vunpack.c.l.bf16 %v41
  %v1944 = vunpack.c.l.bf16 %v42
  %v1945 = vunpack.c.l.bf16 %v43
  %v1946 = vunpack.c.l.bf16 %v44
  %v1947 = vunpack.c.l.bf16 %v45
  %v1948 = vunpack.c.l.bf16 %v46
  %v1949 = vunpack.c.l.bf16 %v47
  %v1950 = vunpack.c.l.bf16 %v48
  %v1951 = vunpack.c.l.bf16 %v49
  %v1952 = vunpack.c.l.bf16 %v50
  %v1953 = vunpack.c.l.bf16 %v51
  %v1954 = vunpack.c.l.bf16 %v52
  %v1955 = vunpack.c.l.bf16 %v53
  %v1956 = vunpack.c.l.bf16 %v54
  %v1957 = vunpack.c.l.bf16 %v55
  %v1958 = vunpack.c.l.bf16 %v56
  %v1959 = vunpack.c.l.bf16 %v57
  %v1960 = vunpack.c.l.bf16 %v58
  %v1961 = vunpack.c.l.bf16 %v59
  %v1962 = vunpack.c.l.bf16 %v60
  %v1963 = vunpack.c.l.bf16 %v61
  %v1964 = vunpack.c.l.bf16 %v62
  %v1965 = vunpack.c.l.bf16 %v63
  %v1966 = vadd.f32 %v1916, %v1941
  %v1967 = vadd.f32 %v1917, %v1942
  %v1968 = vadd.f32 %v1918, %v1943
  %v1969 = vadd.f32 %v1919, %v1944
  %v1970 = vadd.f32 %v1920, %v1945
  %v1971 = vadd.f32 %v1921, %v1946
  %v1972 = vadd.f32 %v1922, %v1947
  %v1973 = vadd.f32 %v1923, %v1948
  %v1974 = vadd.f32 %v1924, %v1949
  %v1975 = vadd.f32 %v1925, %v1950
  %v1976 = vadd.f32 %v1926, %v1951
  %v1977 = vadd.f32 %v1927, %v1952
  %v1978 = vadd.f32 %v1928, %v1953
  %v1979 = vadd.f32 %v1929, %v1954
  %v1980 = vadd.f32 %v1930, %v1955
  %v1981 = vadd.f32 %v1931, %v1956
  %v1982 = vadd.f32 %v1932, %v1957
  %v1983 = vadd.f32 %v1933, %v1958
  %v1984 = vadd.f32 %v1934, %v1959
  %v1985 = vadd.f32 %v1935, %v1960
  %v1986 = vadd.f32 %v1936, %v1961
  %v1987 = vadd.f32 %v1937, %v1962
  %v1988 = vadd.f32 %v1938, %v1963
  %v1989 = vadd.f32 %v1939, %v1964
  %v1990 = vadd.f32 %v1940, %v1965
  %1991 = vst.msk [vmem:[%s11] sm:$0xff] %vm415, %v1966
  %1992 = vst.msk [vmem:[%s11 + $0x8] sm:$0xff] %vm415, %v1967
  %1993 = vst.msk [vmem:[%s11 + $0x10] sm:$0xff] %vm415, %v1968
  %1994 = vst.msk [vmem:[%s11 + $0x18] sm:$0xff] %vm415, %v1969
  %1995 = vst.msk [vmem:[%s11 + $0x20] sm:$0xff] %vm415, %v1970
  %1996 = vst.msk [vmem:[%s11 + $0x28] sm:$0xff] %vm415, %v1971
  %1997 = vst.msk [vmem:[%s11 + $0x30] sm:$0xff] %vm415, %v1972
  %1998 = vst.msk [vmem:[%s11 + $0x38] sm:$0xff] %vm415, %v1973
  %1999 = vst.msk [vmem:[%s11 + $0x40] sm:$0xff] %vm415, %v1974
  %2000 = vst.msk [vmem:[%s11 + $0x48] sm:$0xff] %vm415, %v1975
  %2001 = vst.msk [vmem:[%s11 + $0x50] sm:$0xff] %vm415, %v1976
  %2002 = vst.msk [vmem:[%s11 + $0x58] sm:$0xff] %vm415, %v1977
  %2003 = vst.msk [vmem:[%s11 + $0x60] sm:$0xff] %vm415, %v1978
  %2004 = vst.msk [vmem:[%s11 + $0x68] sm:$0xff] %vm415, %v1979
  %2005 = vst.msk [vmem:[%s11 + $0x70] sm:$0xff] %vm415, %v1980
  %2006 = vst.msk [vmem:[%s11 + $0x78] sm:$0xff] %vm415, %v1981
  %2007 = vst.msk [vmem:[%s11 + $0x80] sm:$0xff] %vm415, %v1982
  %2008 = vst.msk [vmem:[%s11 + $0x88] sm:$0xff] %vm415, %v1983
  %2009 = vst.msk [vmem:[%s11 + $0x90] sm:$0xff] %vm415, %v1984
  %2010 = vst.msk [vmem:[%s11 + $0x98] sm:$0xff] %vm415, %v1985
  %2011 = vst.msk [vmem:[%s11 + $0xa0] sm:$0xff] %vm415, %v1986
  %2012 = vst.msk [vmem:[%s11 + $0xa8] sm:$0xff] %vm415, %v1987
  %2013 = vst.msk [vmem:[%s11 + $0xb0] sm:$0xff] %vm415, %v1988
  %2014 = vst.msk [vmem:[%s11 + $0xb8] sm:$0xff] %vm415, %v1989
  %2015 = vst.msk [vmem:[%s11 + $0xc0] sm:$0xff] %vm415, %v1990
  // Predicated region
  $region46: #{tpu_custom_call.1} parent=0 // pred_check
    _
  $region47: #{tpu_custom_call.1} parent=0 // pred_check_branch
    %2017 = sbr.rel (0) target = $region49
  $region48: #{tpu_custom_call.1} parent=0 // pred_region
    _
  $region49: #{tpu_custom_call.1} parent=0 // pred_fallthru
    _
  // Predicated region
  $region50: #{tpu_custom_call.1} parent=0 // pred_check
    _
  $region51: #{tpu_custom_call.1} parent=0 // pred_check_branch
    %2019 = sbr.rel (0) target = $region53
  $region52: #{tpu_custom_call.1} parent=0 // pred_region
    _
  $region53: #{tpu_custom_call.1} parent=0 // pred_fallthru
    _

</llo_original>
